<compile_context>
chip_gen: v6e
topology: v6e:2x2x1
jax: 0.10.0
libtpu: 0.0.40
codegen_flags: <defaults>
</compile_context>

<pallas_src>
import functools
import math

import jax
import jax.numpy as jnp
from jax.experimental import pallas as pl
from jax.experimental.pallas import tpu as pltpu


def _rpn_head_kernel(x_ref, halo_ref, w3_ref, b3_ref, wsd_ref, bsd_ref,
                     out_ref, xp_ref, *, W):
    """One (batch, row-strip) block of one feature level.

    x_ref    : [1, C, T]      f32 row-strip of x, T = R*W flattened (row-major)
    halo_ref : [1, 1, 2C, W]  f32 halo rows: [row above strip ; row below strip]
    w3_ref   : [9, C, C]      bf16 3x3 conv weights, tap-major (kh*3 + kw)
    b3_ref   : [C, 1]         f32 conv bias
    wsd_ref  : [5A, C]        bf16 fused score|delta 1x1 conv weights
    bsd_ref  : [5A, 1]        f32 fused score|delta bias
    out_ref  : [1, 5A, T]     f32 fused output (scores rows first, deltas after)
    xp_ref   : [C, T+2W+2]    bf16 VMEM scratch: haloed, zero-edged strip
    """
    C = w3_ref.shape[1]
    T = x_ref.shape[2]
    cdt = w3_ref.dtype  # bf16 compute dtype for the MXU

    # --- assemble the haloed strip in VMEM scratch ---------------------------
    # xp = [0 | row r0-1 | rows r0 .. r0+R-1 (the strip) | row r0+R | 0]
    # so the 3x3 tap (kh, kw) is the contiguous slice
    #   xp[:, kh*W + kw : kh*W + kw + T]
    # (plus column-edge masking for kw != 1, see below).
    halo = halo_ref[0, 0].astype(cdt)                       # (2C, W)
    zcol = jnp.zeros((C, 1), cdt)
    xp_ref[:, 0:1] = zcol                                   # left zero pad
    xp_ref[:, 1:1 + W] = halo[:C, :]                        # row above strip
    xp_ref[:, 1 + W:1 + W + T] = x_ref[0].astype(cdt)       # strip (cast here)
    xp_ref[:, 1 + W + T:1 + 2 * W + T] = halo[C:, :]        # row below strip
    xp_ref[:, 1 + 2 * W + T:2 + 2 * W + T] = zcol           # right zero pad

    # Column validity masks on the flattened spatial axis: a +/-1 shift along
    # the flattened axis wraps across row boundaries, which must read the
    # padding=1 zeros instead.
    col = jax.lax.broadcasted_iota(jnp.int32, (1, T), 1) % W
    not_first_col = col != 0            # w-1 exists
    not_last_col = col != (W - 1)       # w+1 exists
    zero = jnp.zeros((), cdt)

    # --- 3x3 conv as nine accumulating K=C matmuls ----------------------------
    acc = jnp.zeros((C, T), jnp.float32)
    for kh in range(3):
        for kw in range(3):
            o = kh * W + kw
            tap = xp_ref[:, o:o + T]                        # (C, T) bf16
            if kw == 0:
                tap = jnp.where(not_first_col, tap, zero)
            elif kw == 2:
                tap = jnp.where(not_last_col, tap, zero)
            acc = acc + jnp.dot(w3_ref[kh * 3 + kw], tap,
                                preferred_element_type=jnp.float32)

    feat = jnp.maximum(acc + b3_ref[...], 0.0).astype(cdt)  # ReLU, (C, T)

    # --- fused score + delta 1x1 conv: one matmul, one lane-dense store ------
    out = jnp.dot(wsd_ref[...], feat, preferred_element_type=jnp.float32)
    out_ref[0] = (out + bsd_ref[...]).astype(out_ref.dtype)


def _pick_rows(H, W, C, *, t_cap=1024, in_budget_bytes=6 << 20):
    """Choose rows-per-strip R and padded height Hp for spatial tiling.

    Strips are whole image rows so the 3x3 halo is exactly one row above and
    below.  Prefer the largest divisor of H whose strip width T = R*W is
    128-lane aligned, capped around 1024 lanes: big enough to amortize the
    ~0.35us/grid-step overhead (~85% of HBM roofline), small enough that a
    double-buffered f32 input block stays far below scoped VMEM on v5e
    (16 MiB default) and v7x (32 MiB scoped / 64 MiB physical) even at
    production channel counts.
    """
    def fits(r):
        return 2 * C * r * W * 4 <= in_budget_bytes

    divs = [r for r in range(1, H + 1) if H % r == 0]
    aligned = [r for r in divs
               if (r * W) % 128 == 0 and r * W <= t_cap and fits(r)]
    if aligned:
        return max(aligned), H
    if H * W <= t_cap and fits(H):
        return H, H                      # tiny level: one full-image strip
    # No suitable divisor: zero-pad H to a multiple of the smallest
    # lane-aligned strip height (padded rows are dropped by the wrapper).
    r = 128 // math.gcd(128, W)
    while 2 * r * W <= t_cap and fits(2 * r) and 2 * r < H:
        r *= 2
    hp = -(-H // r) * r
    return r, hp


def rpn_head_level(x_nchw, kparams):
    """Fused RPN head on one feature level.

    x_nchw: [N, C, H, W] f32 (PyTorch layout).  Returns NCHW outputs:
      scores: [N, A, H, W],  deltas: [N, 4A, H, W]
    """
    w3_9, b3, wsd, bsd = kparams
    N, C, H, W = x_nchw.shape
    A5 = wsd.shape[0]
    A = A5 // 5

    R, Hp = _pick_rows(H, W, C)
    x_work = x_nchw if Hp == H else jnp.pad(
        x_nchw, ((0, 0), (0, 0), (0, Hp - H), (0, 0)))
    S = Hp // R
    T = R * W
    HWp = Hp * W

    # Flattened spatial view: a free, layout-preserving reshape; x stays f32
    # in HBM (no wrapper cast pass) and is read exactly once by the kernel.
    x_flat = x_work.reshape(N, C, HWp)

    # Per-strip halo rows (the image row just above and just below each strip,
    # zeros at the image border -> reproduces the conv's padding=1).  This is
    # a tiny side array (2 rows per strip, ~2/R of x).
    zrow = jnp.zeros((N, C, 1, W), x_work.dtype)
    tops = jnp.concatenate([zrow, x_work[:, :, R - 1:Hp - 1:R, :]], axis=2)
    bots = jnp.concatenate([x_work[:, :, R:Hp:R, :], zrow], axis=2)
    halos = jnp.transpose(jnp.concatenate([tops, bots], axis=1),
                          (0, 2, 1, 3))                      # (N, S, 2C, W)

    kernel = functools.partial(_rpn_head_kernel, W=W)

    out = pl.pallas_call(
        kernel,
        out_shape=jax.ShapeDtypeStruct((N, A5, HWp), jnp.float32),
        grid_spec=pltpu.PrefetchScalarGridSpec(
            num_scalar_prefetch=0,
            grid=(N, S),                                     # row-strip innermost
            in_specs=[
                pl.BlockSpec((1, C, T), lambda n, s: (n, 0, s)),
                pl.BlockSpec((1, 1, 2 * C, W), lambda n, s: (n, s, 0, 0)),
                # Weights/biases: constant block index -> resident, no re-DMA.
                pl.BlockSpec((9, C, C), lambda n, s: (0, 0, 0)),
                pl.BlockSpec((C, 1), lambda n, s: (0, 0)),
                pl.BlockSpec((A5, C), lambda n, s: (0, 0)),
                pl.BlockSpec((A5, 1), lambda n, s: (0, 0)),
            ],
            out_specs=pl.BlockSpec((1, A5, T), lambda n, s: (n, 0, s)),
            scratch_shapes=[pltpu.VMEM((C, T + 2 * W + 2), w3_9.dtype)],
        ),
        compiler_params=pltpu.CompilerParams(
            dimension_semantics=("parallel", "parallel"),
            vmem_limit_bytes=32 * 1024 * 1024),
    )(x_flat, halos, w3_9, b3, wsd, bsd)

    out = out.reshape(N, A5, Hp, W)
    if Hp != H:
        out = out[:, :, :H, :]
    return out[:, :A], out[:, A:]


def rpn_head_forward(feats, kparams):
    """RPNHead forward (head compute only) over a list of feature levels."""
    scores_list, deltas_list = [], []
    for feat in feats:
        s, d = rpn_head_level(feat, kparams)
        scores_list.append(s)
        deltas_list.append(d)
    # TODO(synk): _gen_proposal (anchors + decode + NMS + topk) not implemented.
    return scores_list, deltas_list


def make_params(key, C, A):
    """Deterministic synthetic parameters in PyTorch layouts."""
    k1, k2, k3, k4, k5, k6 = jax.random.split(key, 6)
    w3_t = 0.05 * jax.random.normal(k1, (C, C, 3, 3), jnp.float32)   # [co, ci, kh, kw]
    b3 = 0.05 * jax.random.normal(k2, (C,), jnp.float32)
    ws_t = 0.05 * jax.random.normal(k3, (A, C), jnp.float32)         # [A, C]
    bs = 0.05 * jax.random.normal(k4, (A,), jnp.float32)
    wd_t = 0.05 * jax.random.normal(k5, (4 * A, C), jnp.float32)     # [4A, C]
    bd = 0.05 * jax.random.normal(k6, (4 * A,), jnp.float32)
    return (w3_t, b3, ws_t, bs, wd_t, bd)


def prepare_kernel_params(torch_params, compute_dtype=jnp.bfloat16):
    """Convert PyTorch-layout weights to the tap-major / fused kernel layout."""
    w3_t, b3, ws_t, bs, wd_t, bd = torch_params
    C_out, C_in = w3_t.shape[0], w3_t.shape[1]
    # [co, ci, kh, kw] -> [kh, kw, co, ci] -> (9, co, ci), tap index = kh*3+kw.
    w3_9 = jnp.transpose(w3_t, (2, 3, 0, 1)).reshape(9, C_out, C_in)
    # Fuse score + delta 1x1 convs: score rows first, then delta rows.
    wsd = jnp.concatenate([ws_t, wd_t], axis=0)                      # (5A, C)
    bsd = jnp.concatenate([bs, bd], axis=0)[:, None]                 # (5A, 1)
    return (w3_9.astype(compute_dtype),
            b3[:, None].astype(jnp.float32),
            wsd.astype(compute_dtype),
            bsd.astype(jnp.float32))


def _reference_level(x_nchw, torch_params):
    """Pure-JAX f32 NCHW reference matching the PyTorch module semantics."""
    w3_t, b3, ws_t, bs, wd_t, bd = torch_params
    dn = ("NCHW", "OIHW", "NCHW")
    feat = jax.lax.conv_general_dilated(x_nchw, w3_t, (1, 1), ((1, 1), (1, 1)),
                                        dimension_numbers=dn)
    feat = jnp.maximum(feat + b3[None, :, None, None], 0.0)
    s = jax.lax.conv_general_dilated(feat, ws_t[:, :, None, None], (1, 1),
                                     ((0, 0), (0, 0)), dimension_numbers=dn)
    s = s + bs[None, :, None, None]
    d = jax.lax.conv_general_dilated(feat, wd_t[:, :, None, None], (1, 1),
                                     ((0, 0), (0, 0)), dimension_numbers=dn)
    d = d + bd[None, :, None, None]
    return s, d


if __name__ == "__main__":
    # Small, module-consistent shapes: batch=2, in_channel=32, three FPN
    # levels (16x16, 8x8, 64x64 — the last forces multi-strip tiling so the
    # cross-strip row-halo path is exercised), num_anchors=3 per location.
    N, C, A = 2, 32, 3
    key = jax.random.PRNGKey(0)
    kf1, kf2, kf3, kp = jax.random.split(key, 4)

    feats = [
        jax.random.normal(kf1, (N, C, 16, 16), jnp.float32),
        jax.random.normal(kf2, (N, C, 8, 8), jnp.float32),
        jax.random.normal(kf3, (N, C, 64, 64), jnp.float32),
    ]
    torch_params = make_params(kp, C, A)
    kparams = prepare_kernel_params(torch_params)          # bf16 weights, f32 biases

    scores_list, deltas_list = rpn_head_forward(feats, kparams)
    scores_list = [jax.block_until_ready(s) for s in scores_list]
    deltas_list = [jax.block_until_ready(d) for d in deltas_list]

    # Correctness check against a pure-JAX f32 NCHW reference (bf16 MXU inputs
    # with f32 accumulation -> loose-ish tolerance).
    for feat, s, d in zip(feats, scores_list, deltas_list):
        s_ref, d_ref = _reference_level(feat, torch_params)
        assert s.shape == s_ref.shape and d.shape == d_ref.shape
        assert jnp.allclose(s, s_ref, atol=5e-2, rtol=5e-2)
        assert jnp.allclose(d, d_ref, atol=5e-2, rtol=5e-2)

    print("KERNEL_OK")
</pallas_src>

<mosaic_0001>
module attributes {stable_mosaic.version = 11 : i64} {
  func.func @_rpn_head_kernel(%arg0: i32, %arg1: i32, %arg2: memref<1x32x256xf32, #tpu.memory_space<vmem>>, %arg3: memref<1x1x64x16xf32, #tpu.memory_space<vmem>>, %arg4: memref<9x32x32xbf16, #tpu.memory_space<vmem>>, %arg5: memref<32x1xf32, #tpu.memory_space<vmem>>, %arg6: memref<15x32xbf16, #tpu.memory_space<vmem>>, %arg7: memref<15x1xf32, #tpu.memory_space<vmem>>, %arg8: memref<1x15x256xf32, #tpu.memory_space<vmem>>, %arg9: memref<32x290xbf16, #tpu.memory_space<vmem>>) attributes {dimension_semantics = [#tpu.dimension_semantics<parallel>, #tpu.dimension_semantics<parallel>], iteration_bounds = array<i64: 2, 1>, scalar_prefetch = 0 : i64, scratch_operands = 1 : i64, tpu.core_type = #tpu.core_type<tc>, window_params = [{transform_indices = @transform_0, window_bounds = array<i64: 1, 32, 256>}, {transform_indices = @transform_1, window_bounds = array<i64: 1, 1, 64, 16>}, {pipeline_mode = #tpu.pipeline_mode<synchronous>, transform_indices = @transform_2, window_bounds = array<i64: 9, 32, 32>}, {pipeline_mode = #tpu.pipeline_mode<synchronous>, transform_indices = @transform_3, window_bounds = array<i64: 32, 1>}, {pipeline_mode = #tpu.pipeline_mode<synchronous>, transform_indices = @transform_4, window_bounds = array<i64: 15, 32>}, {pipeline_mode = #tpu.pipeline_mode<synchronous>, transform_indices = @transform_5, window_bounds = array<i64: 15, 1>}, {transform_indices = @transform_6, window_bounds = array<i64: 1, 15, 256>}]} {
    %c0 = arith.constant 0 : index
    %c0_0 = arith.constant 0 : index
    %c0_1 = arith.constant 0 : index
    %c0_2 = arith.constant 0 : index
    %0 = vector.load %arg3[%c0, %c0_0, %c0_1, %c0_2] : memref<1x1x64x16xf32, #tpu.memory_space<vmem>>, vector<1x1x64x16xf32>
    %1 = vector.shape_cast %0 : vector<1x1x64x16xf32> to vector<64x16xf32>
    %2 = arith.truncf %1 : vector<64x16xf32> to vector<64x16xbf16>
    %cst = arith.constant 0.000000e+00 : bf16
    %3 = vector.broadcast %cst : bf16 to vector<32x1xbf16>
    %c0_3 = arith.constant 0 : index
    %c0_4 = arith.constant 0 : index
    %4 = vector.load %arg9[%c0_3, %c0_4] : memref<32x290xbf16, #tpu.memory_space<vmem>>, vector<32x1xbf16>
    tpu.vector_store %arg9[%c0_3, %c0_4], %3 {strides = array<i32>} : memref<32x290xbf16, #tpu.memory_space<vmem>>, vector<32x1xbf16>,
    %5 = vector.extract_strided_slice %2 {offsets = [0, 0], sizes = [32, 16], strides = [1, 1]} : vector<64x16xbf16> to vector<32x16xbf16>
    %c0_5 = arith.constant 0 : index
    %c1 = arith.constant 1 : index
    %6 = vector.load %arg9[%c0_5, %c1] : memref<32x290xbf16, #tpu.memory_space<vmem>>, vector<32x16xbf16>
    tpu.vector_store %arg9[%c0_5, %c1], %5 {strides = array<i32>} : memref<32x290xbf16, #tpu.memory_space<vmem>>, vector<32x16xbf16>,
    %c0_6 = arith.constant 0 : index
    %c0_7 = arith.constant 0 : index
    %c0_8 = arith.constant 0 : index
    %7 = vector.load %arg2[%c0_6, %c0_7, %c0_8] : memref<1x32x256xf32, #tpu.memory_space<vmem>>, vector<1x32x256xf32>
    %8 = vector.shape_cast %7 : vector<1x32x256xf32> to vector<32x256xf32>
    %9 = arith.truncf %8 : vector<32x256xf32> to vector<32x256xbf16>
    %c0_9 = arith.constant 0 : index
    %c17 = arith.constant 17 : index
    %10 = vector.load %arg9[%c0_9, %c17] : memref<32x290xbf16, #tpu.memory_space<vmem>>, vector<32x256xbf16>
    tpu.vector_store %arg9[%c0_9, %c17], %9 {strides = array<i32>} : memref<32x290xbf16, #tpu.memory_space<vmem>>, vector<32x256xbf16>,
    %11 = vector.extract_strided_slice %2 {offsets = [32, 0], sizes = [32, 16], strides = [1, 1]} : vector<64x16xbf16> to vector<32x16xbf16>
    %c0_10 = arith.constant 0 : index
    %c273 = arith.constant 273 : index
    %12 = vector.load %arg9[%c0_10, %c273] : memref<32x290xbf16, #tpu.memory_space<vmem>>, vector<32x16xbf16>
    tpu.vector_store %arg9[%c0_10, %c273], %11 {strides = array<i32>} : memref<32x290xbf16, #tpu.memory_space<vmem>>, vector<32x16xbf16>,
    %c0_11 = arith.constant 0 : index
    %c289 = arith.constant 289 : index
    %13 = vector.load %arg9[%c0_11, %c289] : memref<32x290xbf16, #tpu.memory_space<vmem>>, vector<32x1xbf16>
    tpu.vector_store %arg9[%c0_11, %c289], %3 {strides = array<i32>} : memref<32x290xbf16, #tpu.memory_space<vmem>>, vector<32x1xbf16>,
    %14 = tpu.iota {dimensions = array<i32: 1>} : vector<1x256xi32>
    %c16_i32 = arith.constant 16 : i32
    %c0_i32 = arith.constant 0 : i32
    %15 = arith.cmpi eq, %c16_i32, %c0_i32 : i32
    %c1_i32 = arith.constant 1 : i32
    %16 = arith.select %15, %c1_i32, %c16_i32 : i32
    %17 = vector.broadcast %16 : i32 to vector<1x256xi32>
    %18 = arith.remsi %14, %17 : vector<1x256xi32>
    %c0_i32_12 = arith.constant 0 : i32
    %19 = vector.broadcast %c0_i32_12 : i32 to vector<1x256xi32>
    %20 = arith.cmpi ne, %18, %19 : vector<1x256xi32>
    %c0_i32_13 = arith.constant 0 : i32
    %21 = vector.broadcast %c0_i32_13 : i32 to vector<1x256xi32>
    %22 = arith.cmpi slt, %18, %21 : vector<1x256xi32>
    %c0_i32_14 = arith.constant 0 : i32
    %23 = arith.cmpi slt, %16, %c0_i32_14 : i32
    %24 = vector.broadcast %23 : i1 to vector<1x256xi1>
    %25 = vector.broadcast %24 : vector<1x256xi1> to vector<1x256xi1>
    %26 = arith.xori %22, %25 : vector<1x256xi1>
    %27 = arith.andi %26, %20 : vector<1x256xi1>
    %28 = vector.broadcast %16 : i32 to vector<1x256xi32>
    %29 = arith.addi %18, %28 : vector<1x256xi32>
    %30 = arith.select %27, %29, %18 : vector<1x256xi1>, vector<1x256xi32>
    %c0_i32_15 = arith.constant 0 : i32
    %31 = vector.broadcast %c0_i32_15 : i32 to vector<1x256xi32>
    %32 = arith.cmpi ne, %30, %31 : vector<1x256xi32>
    %c15_i32 = arith.constant 15 : i32
    %33 = vector.broadcast %c15_i32 : i32 to vector<1x256xi32>
    %34 = arith.cmpi ne, %30, %33 : vector<1x256xi32>
    %cst_16 = arith.constant 0.000000e+00 : f32
    %35 = vector.broadcast %cst_16 : f32 to vector<32x256xf32>
    %c0_17 = arith.constant 0 : index
    %c0_18 = arith.constant 0 : index
    %36 = vector.load %arg9[%c0_17, %c0_18] : memref<32x290xbf16, #tpu.memory_space<vmem>>, vector<32x256xbf16>
    %cst_19 = arith.constant 0.000000e+00 : bf16
    %37 = vector.shape_cast %32 : vector<1x256xi1> to vector<1x256xi1>
    %38 = vector.broadcast %37 : vector<1x256xi1> to vector<32x256xi1>
    %39 = vector.broadcast %cst_19 : bf16 to vector<32x256xbf16>
    %40 = arith.select %38, %36, %39 : vector<32x256xi1>, vector<32x256xbf16>
    %c0_20 = arith.constant 0 : index
    %c0_21 = arith.constant 0 : index
    %c0_22 = arith.constant 0 : index
    %41 = vector.load %arg4[%c0_20, %c0_21, %c0_22] : memref<9x32x32xbf16, #tpu.memory_space<vmem>>, vector<1x32x32xbf16>
    %42 = vector.shape_cast %41 : vector<1x32x32xbf16> to vector<32x32xbf16>
    %cst_23 = arith.constant dense<0.000000e+00> : vector<32x256xf32>
    %43 = tpu.matmul %42, %40, %cst_23 {dimension_numbers = #tpu.dot_dimension_numbers<[1], [0], [0], [1], [0, 0, 1, 1], [], []>} : vector<32x32xbf16>, vector<32x256xbf16>, vector<32x256xf32> -> vector<32x256xf32>
    %44 = arith.addf %35, %43 : vector<32x256xf32>
    %c0_24 = arith.constant 0 : index
    %c1_25 = arith.constant 1 : index
    %45 = vector.load %arg9[%c0_24, %c1_25] : memref<32x290xbf16, #tpu.memory_space<vmem>>, vector<32x256xbf16>
    %c1_26 = arith.constant 1 : index
    %c0_27 = arith.constant 0 : index
    %c0_28 = arith.constant 0 : index
    %46 = vector.load %arg4[%c1_26, %c0_27, %c0_28] : memref<9x32x32xbf16, #tpu.memory_space<vmem>>, vector<1x32x32xbf16>
    %47 = vector.shape_cast %46 : vector<1x32x32xbf16> to vector<32x32xbf16>
    %cst_29 = arith.constant dense<0.000000e+00> : vector<32x256xf32>
    %48 = tpu.matmul %47, %45, %cst_29 {dimension_numbers = #tpu.dot_dimension_numbers<[1], [0], [0], [1], [0, 0, 1, 1], [], []>} : vector<32x32xbf16>, vector<32x256xbf16>, vector<32x256xf32> -> vector<32x256xf32>
    %49 = arith.addf %44, %48 : vector<32x256xf32>
    %c0_30 = arith.constant 0 : index
    %c2 = arith.constant 2 : index
    %50 = vector.load %arg9[%c0_30, %c2] : memref<32x290xbf16, #tpu.memory_space<vmem>>, vector<32x256xbf16>
    %cst_31 = arith.constant 0.000000e+00 : bf16
    %51 = vector.shape_cast %34 : vector<1x256xi1> to vector<1x256xi1>
    %52 = vector.broadcast %51 : vector<1x256xi1> to vector<32x256xi1>
    %53 = vector.broadcast %cst_31 : bf16 to vector<32x256xbf16>
    %54 = arith.select %52, %50, %53 : vector<32x256xi1>, vector<32x256xbf16>
    %c2_32 = arith.constant 2 : index
    %c0_33 = arith.constant 0 : index
    %c0_34 = arith.constant 0 : index
    %55 = vector.load %arg4[%c2_32, %c0_33, %c0_34] : memref<9x32x32xbf16, #tpu.memory_space<vmem>>, vector<1x32x32xbf16>
    %56 = vector.shape_cast %55 : vector<1x32x32xbf16> to vector<32x32xbf16>
    %cst_35 = arith.constant dense<0.000000e+00> : vector<32x256xf32>
    %57 = tpu.matmul %56, %54, %cst_35 {dimension_numbers = #tpu.dot_dimension_numbers<[1], [0], [0], [1], [0, 0, 1, 1], [], []>} : vector<32x32xbf16>, vector<32x256xbf16>, vector<32x256xf32> -> vector<32x256xf32>
    %58 = arith.addf %49, %57 : vector<32x256xf32>
    %c0_36 = arith.constant 0 : index
    %c16 = arith.constant 16 : index
    %59 = vector.load %arg9[%c0_36, %c16] : memref<32x290xbf16, #tpu.memory_space<vmem>>, vector<32x256xbf16>
    %cst_37 = arith.constant 0.000000e+00 : bf16
    %60 = vector.shape_cast %32 : vector<1x256xi1> to vector<1x256xi1>
    %61 = vector.broadcast %60 : vector<1x256xi1> to vector<32x256xi1>
    %62 = vector.broadcast %cst_37 : bf16 to vector<32x256xbf16>
    %63 = arith.select %61, %59, %62 : vector<32x256xi1>, vector<32x256xbf16>
    %c3 = arith.constant 3 : index
    %c0_38 = arith.constant 0 : index
    %c0_39 = arith.constant 0 : index
    %64 = vector.load %arg4[%c3, %c0_38, %c0_39] : memref<9x32x32xbf16, #tpu.memory_space<vmem>>, vector<1x32x32xbf16>
    %65 = vector.shape_cast %64 : vector<1x32x32xbf16> to vector<32x32xbf16>
    %cst_40 = arith.constant dense<0.000000e+00> : vector<32x256xf32>
    %66 = tpu.matmul %65, %63, %cst_40 {dimension_numbers = #tpu.dot_dimension_numbers<[1], [0], [0], [1], [0, 0, 1, 1], [], []>} : vector<32x32xbf16>, vector<32x256xbf16>, vector<32x256xf32> -> vector<32x256xf32>
    %67 = arith.addf %58, %66 : vector<32x256xf32>
    %c0_41 = arith.constant 0 : index
    %c17_42 = arith.constant 17 : index
    %68 = vector.load %arg9[%c0_41, %c17_42] : memref<32x290xbf16, #tpu.memory_space<vmem>>, vector<32x256xbf16>
    %c4 = arith.constant 4 : index
    %c0_43 = arith.constant 0 : index
    %c0_44 = arith.constant 0 : index
    %69 = vector.load %arg4[%c4, %c0_43, %c0_44] : memref<9x32x32xbf16, #tpu.memory_space<vmem>>, vector<1x32x32xbf16>
    %70 = vector.shape_cast %69 : vector<1x32x32xbf16> to vector<32x32xbf16>
    %cst_45 = arith.constant dense<0.000000e+00> : vector<32x256xf32>
    %71 = tpu.matmul %70, %68, %cst_45 {dimension_numbers = #tpu.dot_dimension_numbers<[1], [0], [0], [1], [0, 0, 1, 1], [], []>} : vector<32x32xbf16>, vector<32x256xbf16>, vector<32x256xf32> -> vector<32x256xf32>
    %72 = arith.addf %67, %71 : vector<32x256xf32>
    %c0_46 = arith.constant 0 : index
    %c18 = arith.constant 18 : index
    %73 = vector.load %arg9[%c0_46, %c18] : memref<32x290xbf16, #tpu.memory_space<vmem>>, vector<32x256xbf16>
    %cst_47 = arith.constant 0.000000e+00 : bf16
    %74 = vector.shape_cast %34 : vector<1x256xi1> to vector<1x256xi1>
    %75 = vector.broadcast %74 : vector<1x256xi1> to vector<32x256xi1>
    %76 = vector.broadcast %cst_47 : bf16 to vector<32x256xbf16>
    %77 = arith.select %75, %73, %76 : vector<32x256xi1>, vector<32x256xbf16>
    %c5 = arith.constant 5 : index
    %c0_48 = arith.constant 0 : index
    %c0_49 = arith.constant 0 : index
    %78 = vector.load %arg4[%c5, %c0_48, %c0_49] : memref<9x32x32xbf16, #tpu.memory_space<vmem>>, vector<1x32x32xbf16>
    %79 = vector.shape_cast %78 : vector<1x32x32xbf16> to vector<32x32xbf16>
    %cst_50 = arith.constant dense<0.000000e+00> : vector<32x256xf32>
    %80 = tpu.matmul %79, %77, %cst_50 {dimension_numbers = #tpu.dot_dimension_numbers<[1], [0], [0], [1], [0, 0, 1, 1], [], []>} : vector<32x32xbf16>, vector<32x256xbf16>, vector<32x256xf32> -> vector<32x256xf32>
    %81 = arith.addf %72, %80 : vector<32x256xf32>
    %c0_51 = arith.constant 0 : index
    %c32 = arith.constant 32 : index
    %82 = vector.load %arg9[%c0_51, %c32] : memref<32x290xbf16, #tpu.memory_space<vmem>>, vector<32x256xbf16>
    %cst_52 = arith.constant 0.000000e+00 : bf16
    %83 = vector.shape_cast %32 : vector<1x256xi1> to vector<1x256xi1>
    %84 = vector.broadcast %83 : vector<1x256xi1> to vector<32x256xi1>
    %85 = vector.broadcast %cst_52 : bf16 to vector<32x256xbf16>
    %86 = arith.select %84, %82, %85 : vector<32x256xi1>, vector<32x256xbf16>
    %c6 = arith.constant 6 : index
    %c0_53 = arith.constant 0 : index
    %c0_54 = arith.constant 0 : index
    %87 = vector.load %arg4[%c6, %c0_53, %c0_54] : memref<9x32x32xbf16, #tpu.memory_space<vmem>>, vector<1x32x32xbf16>
    %88 = vector.shape_cast %87 : vector<1x32x32xbf16> to vector<32x32xbf16>
    %cst_55 = arith.constant dense<0.000000e+00> : vector<32x256xf32>
    %89 = tpu.matmul %88, %86, %cst_55 {dimension_numbers = #tpu.dot_dimension_numbers<[1], [0], [0], [1], [0, 0, 1, 1], [], []>} : vector<32x32xbf16>, vector<32x256xbf16>, vector<32x256xf32> -> vector<32x256xf32>
    %90 = arith.addf %81, %89 : vector<32x256xf32>
    %c0_56 = arith.constant 0 : index
    %c33 = arith.constant 33 : index
    %91 = vector.load %arg9[%c0_56, %c33] : memref<32x290xbf16, #tpu.memory_space<vmem>>, vector<32x256xbf16>
    %c7 = arith.constant 7 : index
    %c0_57 = arith.constant 0 : index
    %c0_58 = arith.constant 0 : index
    %92 = vector.load %arg4[%c7, %c0_57, %c0_58] : memref<9x32x32xbf16, #tpu.memory_space<vmem>>, vector<1x32x32xbf16>
    %93 = vector.shape_cast %92 : vector<1x32x32xbf16> to vector<32x32xbf16>
    %cst_59 = arith.constant dense<0.000000e+00> : vector<32x256xf32>
    %94 = tpu.matmul %93, %91, %cst_59 {dimension_numbers = #tpu.dot_dimension_numbers<[1], [0], [0], [1], [0, 0, 1, 1], [], []>} : vector<32x32xbf16>, vector<32x256xbf16>, vector<32x256xf32> -> vector<32x256xf32>
    %95 = arith.addf %90, %94 : vector<32x256xf32>
    %c0_60 = arith.constant 0 : index
    %c34 = arith.constant 34 : index
    %96 = vector.load %arg9[%c0_60, %c34] : memref<32x290xbf16, #tpu.memory_space<vmem>>, vector<32x256xbf16>
    %cst_61 = arith.constant 0.000000e+00 : bf16
    %97 = vector.shape_cast %34 : vector<1x256xi1> to vector<1x256xi1>
    %98 = vector.broadcast %97 : vector<1x256xi1> to vector<32x256xi1>
    %99 = vector.broadcast %cst_61 : bf16 to vector<32x256xbf16>
    %100 = arith.select %98, %96, %99 : vector<32x256xi1>, vector<32x256xbf16>
    %c8 = arith.constant 8 : index
    %c0_62 = arith.constant 0 : index
    %c0_63 = arith.constant 0 : index
    %101 = vector.load %arg4[%c8, %c0_62, %c0_63] : memref<9x32x32xbf16, #tpu.memory_space<vmem>>, vector<1x32x32xbf16>
    %102 = vector.shape_cast %101 : vector<1x32x32xbf16> to vector<32x32xbf16>
    %cst_64 = arith.constant dense<0.000000e+00> : vector<32x256xf32>
    %103 = tpu.matmul %102, %100, %cst_64 {dimension_numbers = #tpu.dot_dimension_numbers<[1], [0], [0], [1], [0, 0, 1, 1], [], []>} : vector<32x32xbf16>, vector<32x256xbf16>, vector<32x256xf32> -> vector<32x256xf32>
    %104 = arith.addf %95, %103 : vector<32x256xf32>
    %c0_65 = arith.constant 0 : index
    %c0_66 = arith.constant 0 : index
    %105 = vector.load %arg5[%c0_65, %c0_66] : memref<32x1xf32, #tpu.memory_space<vmem>>, vector<32x1xf32>
    %106 = vector.broadcast %105 : vector<32x1xf32> to vector<32x256xf32>
    %107 = arith.addf %104, %106 : vector<32x256xf32>
    %cst_67 = arith.constant 0.000000e+00 : f32
    %108 = vector.broadcast %cst_67 : f32 to vector<32x256xf32>
    %109 = arith.maximumf %107, %108 : vector<32x256xf32>
    %110 = arith.truncf %109 : vector<32x256xf32> to vector<32x256xbf16>
    %c0_68 = arith.constant 0 : index
    %c0_69 = arith.constant 0 : index
    %111 = vector.load %arg6[%c0_68, %c0_69] : memref<15x32xbf16, #tpu.memory_space<vmem>>, vector<15x32xbf16>
    %cst_70 = arith.constant dense<0.000000e+00> : vector<15x256xf32>
    %112 = tpu.matmul %111, %110, %cst_70 {dimension_numbers = #tpu.dot_dimension_numbers<[1], [0], [0], [1], [0, 0, 1, 1], [], []>} : vector<15x32xbf16>, vector<32x256xbf16>, vector<15x256xf32> -> vector<15x256xf32>
    %c0_71 = arith.constant 0 : index
    %c0_72 = arith.constant 0 : index
    %113 = vector.load %arg7[%c0_71, %c0_72] : memref<15x1xf32, #tpu.memory_space<vmem>>, vector<15x1xf32>
    %114 = vector.broadcast %113 : vector<15x1xf32> to vector<15x256xf32>
    %115 = arith.addf %112, %114 : vector<15x256xf32>
    %c0_73 = arith.constant 0 : index
    %c0_74 = arith.constant 0 : index
    %c0_75 = arith.constant 0 : index
    %116 = vector.load %arg8[%c0_73, %c0_74, %c0_75] : memref<1x15x256xf32, #tpu.memory_space<vmem>>, vector<1x15x256xf32>
    %117 = vector.shape_cast %116 : vector<1x15x256xf32> to vector<15x256xf32>
    %118 = vector.shape_cast %115 : vector<15x256xf32> to vector<1x15x256xf32>
    tpu.vector_store %arg8[%c0_73, %c0_74, %c0_75], %118 {strides = array<i32>} : memref<1x15x256xf32, #tpu.memory_space<vmem>>, vector<1x15x256xf32>,
    return
  }
  func.func @transform_0(%arg0: i32, %arg1: i32) -> (i32, i32, i32) {
    %c0_i32 = arith.constant 0 : i32
    %c0_i32_0 = arith.constant 0 : i32
    return %arg0, %c0_i32, %arg1 : i32, i32, i32
  }
  func.func @transform_1(%arg0: i32, %arg1: i32) -> (i32, i32, i32, i32) {
    %c0_i32 = arith.constant 0 : i32
    %c0_i32_0 = arith.constant 0 : i32
    %c0_i32_1 = arith.constant 0 : i32
    return %arg0, %arg1, %c0_i32, %c0_i32_0 : i32, i32, i32, i32
  }
  func.func @transform_2(%arg0: i32, %arg1: i32) -> (i32, i32, i32) {
    %c0_i32 = arith.constant 0 : i32
    %c0_i32_0 = arith.constant 0 : i32
    %c0_i32_1 = arith.constant 0 : i32
    %c0_i32_2 = arith.constant 0 : i32
    return %c0_i32, %c0_i32_0, %c0_i32_1 : i32, i32, i32
  }
  func.func @transform_3(%arg0: i32, %arg1: i32) -> (i32, i32) {
    %c0_i32 = arith.constant 0 : i32
    %c0_i32_0 = arith.constant 0 : i32
    %c0_i32_1 = arith.constant 0 : i32
    return %c0_i32, %c0_i32_0 : i32, i32
  }
  func.func @transform_4(%arg0: i32, %arg1: i32) -> (i32, i32) {
    %c0_i32 = arith.constant 0 : i32
    %c0_i32_0 = arith.constant 0 : i32
    %c0_i32_1 = arith.constant 0 : i32
    return %c0_i32, %c0_i32_0 : i32, i32
  }
  func.func @transform_5(%arg0: i32, %arg1: i32) -> (i32, i32) {
    %c0_i32 = arith.constant 0 : i32
    %c0_i32_0 = arith.constant 0 : i32
    %c0_i32_1 = arith.constant 0 : i32
    return %c0_i32, %c0_i32_0 : i32, i32
  }
  func.func @transform_6(%arg0: i32, %arg1: i32) -> (i32, i32, i32) {
    %c0_i32 = arith.constant 0 : i32
    %c0_i32_0 = arith.constant 0 : i32
    return %arg0, %c0_i32, %arg1 : i32, i32, i32
  }
}

</mosaic_0001>

<llo_original>
// kernel: tpu_custom_call.1
$region0: #{tpu_custom_call.1}
  #allocation0 [shape = 'u32[]', space=smem, size = 0x4, offset = 0x4, fixed_abs, tag = 'smem constant byte address 0x4 - core index']
  #allocation1 [shape = 'u32[144,128]{1,0:T(1,128)}', space=vmem, size = 0x12000, scoped, tag = 'internal scratch']
  #allocation2 [shape = 'bf16[32,290]{1,0:T(8,128)(2,1)}', space=vmem, size = 0x6000, scoped, tag = 'scratch operand']
  %s0 = inlined_call_operand.hbm [shape: f32[2,32,256], index: 0, kind: input, shape index: {}]
  %s1 = inlined_call_operand.vmem [shape: f32[2,1,64,16], index: 1, kind: input, shape index: {}]
  %s2 = inlined_call_operand.vmem [shape: bf16[9,32,32], index: 2, kind: input, shape index: {}]
  %s3 = inlined_call_operand.vmem [shape: f32[32,1], index: 3, kind: input, shape index: {}]
  %s4 = inlined_call_operand.vmem [shape: bf16[15,32], index: 4, kind: input, shape index: {}]
  %s5 = inlined_call_operand.vmem [shape: f32[15,1], index: 5, kind: input, shape index: {}]
  %s6 = inlined_call_operand.vmem [shape: f32[2,15,256], index: 6, kind: output, shape index: {}]
  %s7 = sld [smem:[#allocation0]]
  $region61: #{tpu_custom_call.1} parent=0
    _
  %s9 = ssub.s32 1, %s7
  %s10 = scalar_select 0, %s9, %s7
  $region1: #{tpu_custom_call.1} parent=0
    #allocation3 [shape = 'u8[65536]{0}', space=vmem, size = 0x10000, scoped, tag = 'input window, operand 0']
    #allocation4 [shape = 's32[2]{0}', space=sflag, size = 0x8, scoped, tag = 'scoped memory for tpu_custom_call.1']
    %11 = vsyncpa [#allocation4], 0
    %s12 = scalar_lea.sflag [#allocation4], 1
    %13 = vsyncpa %s12, 0
    loop: start=0, step=1, limit=4
    $region2: #{tpu_custom_call.1} parent=1 // loop_pre_header
      _
    $region3: #{tpu_custom_call.1} parent=1 // loop_header
      %s15 = sphi 0, %s19
      %p16 = scmp.ge.s32.totalorder %s15, 4
      %s22 = sphi 0, %s34
      %s23 = sphi 0, %s30
      %s24 = sphi 0, %s22
      %s25 = sphi 0, %s23
      %s26 = sphi 0, %s24
      %s27 = sphi 0, %s25
      %s39 = sphi 0, %s41
      %s42 = sphi 0, %s39
      %s43 = sphi 0, %s42
      %s59 = sphi 0, %s43
      %s67 = sphi 0, %s69
      %s70 = sphi 0, %s67
      %s71 = sphi 0, %s70
      %s87 = sphi 0, %s71
      %s91 = sphi 0, %s91
      %s93 = sphi 0, %s91
      %s94 = sphi 0, %s93
      %s108 = sphi 0, %s94
      %s112 = sphi 0, %s112
      %s114 = sphi 0, %s112
      %s115 = sphi 0, %s114
      %s129 = sphi 0, %s115
      %s133 = sphi 0, %s133
      %s135 = sphi 0, %s133
      %s136 = sphi 0, %s135
      %s150 = sphi 0, %s136
      %s154 = sphi 0, %s154
      %s156 = sphi 0, %s154
      %s157 = sphi 0, %s156
      %s171 = sphi 0, %s157
      %s179 = sphi 0, %s181
      %s182 = sphi 0, %s179
      %s183 = sphi 0, %s182
      %s199 = sphi 0, %s183
    $region4: #{tpu_custom_call.1} parent=1 // loop_header_branch
      %18 = sbr.rel (%p16) target = $region8
    $region5: #{tpu_custom_call.1} parent=1 // loop_body
      %s20 = ssub.s32 %s15, 1
      %s21 = ssub.s32 %s15, 2
      %s28 = sadd.s32 1, %s23
      %p29 = scmp.ge.s32.totalorder %s28, 1
      %s30 = scalar_select %p29, 0, %s28
      %s31 = sadd.s32 1, %s22
      %s32 = scalar_select %p29, %s31, %s22
      %p33 = scmp.ge.s32.totalorder %s32, 2
      %s34 = scalar_select %p33, 0, %s32
      %s35 = ssub.s32 %s22, %s34
      %s36 = ssub.s32 %s23, %s30
      %s37 = sor.u32 %s35, %s36
      %p38 = scmp.eq.s32.totalorder %s37, 0
      %s40 = sadd.s32 %s39, 1
      %s41 = scalar_select %p38, %s39, %s40
      %p44 = pneg %p38
      %p45 = scmp.eq.s32.totalorder %s15, 1
      %p46 = por %p44, %p45
      %p47 = scmp.ne.s32.totalorder %s39, %s42
      %p48 = scmp.eq.s32.totalorder %s15, 0
      %p49 = por %p47, %p48
      %p50 = scmp.ne.s32.totalorder %s39, %s42
      %p51 = scmp.eq.s32.totalorder %s20, 1
      %p52 = por %p50, %p51
      %p53 = scmp.ne.s32.totalorder %s42, %s43
      %p54 = scmp.eq.s32.totalorder %s20, 0
      %p55 = por %p53, %p54
      %p56 = scmp.ne.s32.totalorder %s42, %s43
      %p57 = scmp.eq.s32.totalorder %s21, 1
      %p58 = por %p56, %p57
      %p60 = scmp.ne.s32.totalorder %s43, %s59
      %p61 = scmp.eq.s32.totalorder %s21, 0
      %p62 = por %p60, %p61
      %s63 = ssub.s32 %s22, %s34
      %s64 = ssub.s32 %s23, %s30
      %s65 = sor.u32 %s63, %s64
      %p66 = scmp.eq.s32.totalorder %s65, 0
      %s68 = sadd.s32 %s67, 1
      %s69 = scalar_select %p66, %s67, %s68
      %p72 = pneg %p66
      %p73 = scmp.eq.s32.totalorder %s15, 1
      %p74 = por %p72, %p73
      %p75 = scmp.ne.s32.totalorder %s67, %s70
      %p76 = scmp.eq.s32.totalorder %s15, 0
      %p77 = por %p75, %p76
      %p78 = scmp.ne.s32.totalorder %s67, %s70
      %p79 = scmp.eq.s32.totalorder %s20, 1
      %p80 = por %p78, %p79
      %p81 = scmp.ne.s32.totalorder %s70, %s71
      %p82 = scmp.eq.s32.totalorder %s20, 0
      %p83 = por %p81, %p82
      %p84 = scmp.ne.s32.totalorder %s70, %s71
      %p85 = scmp.eq.s32.totalorder %s21, 1
      %p86 = por %p84, %p85
      %p88 = scmp.ne.s32.totalorder %s71, %s87
      %p89 = scmp.eq.s32.totalorder %s21, 0
      %p90 = por %p88, %p89
      %s92 = sadd.s32 %s91, 1
      %p95 = scmp.eq.s32.totalorder %s15, 1
      %p96 = scmp.ne.s32.totalorder %s91, %s93
      %p97 = scmp.eq.s32.totalorder %s15, 0
      %p98 = por %p96, %p97
      %p99 = scmp.ne.s32.totalorder %s91, %s93
      %p100 = scmp.eq.s32.totalorder %s20, 1
      %p101 = por %p99, %p100
      %p102 = scmp.ne.s32.totalorder %s93, %s94
      %p103 = scmp.eq.s32.totalorder %s20, 0
      %p104 = por %p102, %p103
      %p105 = scmp.ne.s32.totalorder %s93, %s94
      %p106 = scmp.eq.s32.totalorder %s21, 1
      %p107 = por %p105, %p106
      %p109 = scmp.ne.s32.totalorder %s94, %s108
      %p110 = scmp.eq.s32.totalorder %s21, 0
      %p111 = por %p109, %p110
      %s113 = sadd.s32 %s112, 1
      %p116 = scmp.eq.s32.totalorder %s15, 1
      %p117 = scmp.ne.s32.totalorder %s112, %s114
      %p118 = scmp.eq.s32.totalorder %s15, 0
      %p119 = por %p117, %p118
      %p120 = scmp.ne.s32.totalorder %s112, %s114
      %p121 = scmp.eq.s32.totalorder %s20, 1
      %p122 = por %p120, %p121
      %p123 = scmp.ne.s32.totalorder %s114, %s115
      %p124 = scmp.eq.s32.totalorder %s20, 0
      %p125 = por %p123, %p124
      %p126 = scmp.ne.s32.totalorder %s114, %s115
      %p127 = scmp.eq.s32.totalorder %s21, 1
      %p128 = por %p126, %p127
      %p130 = scmp.ne.s32.totalorder %s115, %s129
      %p131 = scmp.eq.s32.totalorder %s21, 0
      %p132 = por %p130, %p131
      %s134 = sadd.s32 %s133, 1
      %p137 = scmp.eq.s32.totalorder %s15, 1
      %p138 = scmp.ne.s32.totalorder %s133, %s135
      %p139 = scmp.eq.s32.totalorder %s15, 0
      %p140 = por %p138, %p139
      %p141 = scmp.ne.s32.totalorder %s133, %s135
      %p142 = scmp.eq.s32.totalorder %s20, 1
      %p143 = por %p141, %p142
      %p144 = scmp.ne.s32.totalorder %s135, %s136
      %p145 = scmp.eq.s32.totalorder %s20, 0
      %p146 = por %p144, %p145
      %p147 = scmp.ne.s32.totalorder %s135, %s136
      %p148 = scmp.eq.s32.totalorder %s21, 1
      %p149 = por %p147, %p148
      %p151 = scmp.ne.s32.totalorder %s136, %s150
      %p152 = scmp.eq.s32.totalorder %s21, 0
      %p153 = por %p151, %p152
      %s155 = sadd.s32 %s154, 1
      %p158 = scmp.eq.s32.totalorder %s15, 1
      %p159 = scmp.ne.s32.totalorder %s154, %s156
      %p160 = scmp.eq.s32.totalorder %s15, 0
      %p161 = por %p159, %p160
      %p162 = scmp.ne.s32.totalorder %s154, %s156
      %p163 = scmp.eq.s32.totalorder %s20, 1
      %p164 = por %p162, %p163
      %p165 = scmp.ne.s32.totalorder %s156, %s157
      %p166 = scmp.eq.s32.totalorder %s20, 0
      %p167 = por %p165, %p166
      %p168 = scmp.ne.s32.totalorder %s156, %s157
      %p169 = scmp.eq.s32.totalorder %s21, 1
      %p170 = por %p168, %p169
      %p172 = scmp.ne.s32.totalorder %s157, %s171
      %p173 = scmp.eq.s32.totalorder %s21, 0
      %p174 = por %p172, %p173
      %s175 = ssub.s32 %s22, %s34
      %s176 = ssub.s32 %s23, %s30
      %s177 = sor.u32 %s175, %s176
      %p178 = scmp.eq.s32.totalorder %s177, 0
      %s180 = sadd.s32 %s179, 1
      %s181 = scalar_select %p178, %s179, %s180
      %p184 = pneg %p178
      %p185 = scmp.eq.s32.totalorder %s15, 1
      %p186 = por %p184, %p185
      %p187 = scmp.ne.s32.totalorder %s179, %s182
      %p188 = scmp.eq.s32.totalorder %s15, 0
      %p189 = por %p187, %p188
      %p190 = scmp.ne.s32.totalorder %s179, %s182
      %p191 = scmp.eq.s32.totalorder %s20, 1
      %p192 = por %p190, %p191
      %p193 = scmp.ne.s32.totalorder %s182, %s183
      %p194 = scmp.eq.s32.totalorder %s20, 0
      %p195 = por %p193, %p194
      %p196 = scmp.ne.s32.totalorder %s182, %s183
      %p197 = scmp.eq.s32.totalorder %s21, 1
      %p198 = por %p196, %p197
      %p200 = scmp.ne.s32.totalorder %s183, %s199
      %p201 = scmp.eq.s32.totalorder %s21, 0
      %p202 = por %p200, %p201
      %p203 = scmp.le.s32.totalorder 1, %s15
      %p204 = scmp.lt.s32.totalorder %s15, 3
      %p205 = pnand %p203, %p204
      %p206 = pneg %p205
      // Predicated region
      $region9: #{tpu_custom_call.1} parent=5 // pred_check
        _
      $region10: #{tpu_custom_call.1} parent=5 // pred_check_branch
        %208 = sbr.rel (%p205) target = $region12
      $region11: #{tpu_custom_call.1} parent=5 // pred_region
        %s209 = ssub.s32 %s15, 1
        // Predicated region
        $region13: #{tpu_custom_call.1} parent=11 // pred_check
          %p210 = pneg %p104
        $region14: #{tpu_custom_call.1} parent=11 // pred_check_branch
          %212 = sbr.rel (%p210) target = $region16
        $region15: #{tpu_custom_call.1} parent=11 // pred_region
          _
        $region16: #{tpu_custom_call.1} parent=11 // pred_fallthru
          _
        // Predicated region
        $region17: #{tpu_custom_call.1} parent=11 // pred_check
          %p213 = pneg %p125
        $region18: #{tpu_custom_call.1} parent=11 // pred_check_branch
          %215 = sbr.rel (%p213) target = $region20
        $region19: #{tpu_custom_call.1} parent=11 // pred_region
          _
        $region20: #{tpu_custom_call.1} parent=11 // pred_fallthru
          _
        // Predicated region
        $region21: #{tpu_custom_call.1} parent=11 // pred_check
          %p216 = pneg %p146
        $region22: #{tpu_custom_call.1} parent=11 // pred_check_branch
          %218 = sbr.rel (%p216) target = $region24
        $region23: #{tpu_custom_call.1} parent=11 // pred_region
          _
        $region24: #{tpu_custom_call.1} parent=11 // pred_fallthru
          _
        // Predicated region
        $region25: #{tpu_custom_call.1} parent=11 // pred_check
          %p219 = pneg %p167
        $region26: #{tpu_custom_call.1} parent=11 // pred_check_branch
          %221 = sbr.rel (%p219) target = $region28
        $region27: #{tpu_custom_call.1} parent=11 // pred_region
          _
        $region28: #{tpu_custom_call.1} parent=11 // pred_fallthru
          _
      $region12: #{tpu_custom_call.1} parent=5 // pred_fallthru
        _
      %p222 = scmp.lt.s32.totalorder %s15, 2
      // Predicated region
      $region29: #{tpu_custom_call.1} parent=5 // pred_check
        %p223 = pneg %p222
      $region30: #{tpu_custom_call.1} parent=5 // pred_check_branch
        %225 = sbr.rel (%p223) target = $region32
      $region31: #{tpu_custom_call.1} parent=5 // pred_region
        // Predicated region
        $region33: #{tpu_custom_call.1} parent=31 // pred_check
          %p226 = pneg %p49
        $region34: #{tpu_custom_call.1} parent=31 // pred_check_branch
          %228 = sbr.rel (%p226) target = $region36
        $region35: #{tpu_custom_call.1} parent=31 // pred_region
          %s229 = sand.u32 %s39, 1
          %s230 = scalar_lea.sflag [#allocation4], %s229
          %s231 = sand.u32 %s39, 1
          %s232 = smul.addr %s231, 64
          %s233 = scalar_lea.vmem [#allocation3], %s232
          %s234 = smul.u32 2, %s23
          %s236 = ssub.s32 1024, 1024
          %237 = vsyncadd %s230, %s236
          %s238 = smul.addr %s22, 8
          %s239 = sadd.s32 %s234, %s238
          %s240 = smul.addr %s239, 128
          %s241 = scalar_lea.hbm %s0, %s240
          %s242 = sshll.u32 %s233, 4
          %s243 = int_to_ptr.vmem [resolvable:$true] %s242
          %248 = dma.hbm_to_vmem [thread:$0]  %s241, 1024, %s243, %s230, 256, 256, 16
        $region36: #{tpu_custom_call.1} parent=31 // pred_fallthru
          _
        // Predicated region
        $region37: #{tpu_custom_call.1} parent=31 // pred_check
          %p249 = pneg %p77
        $region38: #{tpu_custom_call.1} parent=31 // pred_check_branch
          %251 = sbr.rel (%p249) target = $region40
        $region39: #{tpu_custom_call.1} parent=31 // pred_region
          %p252 = scmp.lt.s32.totalorder %s22, 1
          %s253 = scalar_select %p252, %s22, 1
          %p254 = scmp.lt.s32.totalorder %s23, 0
          %s255 = scalar_select %p254, %s23, 0
          %s256 = smul.addr %s255, 8
          %s257 = smul.addr %s253, 8
          %s258 = sadd.s32 %s256, %s257
          %s259 = smul.addr %s258, 8
          %s260 = scalar_lea.vmem %s1, %s259
        $region40: #{tpu_custom_call.1} parent=31 // pred_fallthru
          _
      $region32: #{tpu_custom_call.1} parent=5 // pred_fallthru
        _
      %p261 = scmp.le.s32.totalorder 1, %s15
      %p262 = scmp.lt.s32.totalorder %s15, 3
      %p263 = pnand %p261, %p262
      %p264 = pneg %p263
      // Predicated region
      $region41: #{tpu_custom_call.1} parent=5 // pred_check
        _
      $region42: #{tpu_custom_call.1} parent=5 // pred_check_branch
        %266 = sbr.rel (%p263) target = $region44
      $region43: #{tpu_custom_call.1} parent=5 // pred_region
        %s267 = ssub.s32 %s15, 1
        %s268 = sand.u32 %s42, 1
        %s269 = scalar_lea.sflag [#allocation4], %s268
        %s270 = sand.u32 %s42, 1
        %s271 = smul.addr %s270, 64
        %s272 = scalar_lea.vmem [#allocation3], %s271
        // Predicated region
        $region45: #{tpu_custom_call.1} parent=43 // pred_check
          %p273 = pneg %p55
        $region46: #{tpu_custom_call.1} parent=43 // pred_check_branch
          %275 = sbr.rel (%p273) target = $region48
        $region47: #{tpu_custom_call.1} parent=43 // pred_region
          %276 = dma.done %s269, 1024
        $region48: #{tpu_custom_call.1} parent=43 // pred_fallthru
          _
        %s277 = sand.u32 %s42, 1
        %s278 = scalar_lea.sflag [#allocation4], %s277
        %s279 = sand.u32 %s42, 1
        %s280 = smul.addr %s279, 64
        %s281 = scalar_lea.vmem [#allocation3], %s280
        %p282 = pneg %p55
        %p283 = pneg %p52
        %p284 = scmp.lt.s32.totalorder %s24, 1
        %s285 = scalar_select %p284, %s24, 1
        %p286 = scmp.lt.s32.totalorder %s25, 0
        %s287 = scalar_select %p286, %s25, 0
        %s288 = smul.addr %s287, 8
        %s289 = smul.addr %s285, 8
        %s290 = sadd.s32 %s288, %s289
        %s291 = smul.addr %s290, 8
        %s292 = scalar_lea.vmem %s1, %s291
        %p293 = pneg %p83
        %p294 = pneg %p80
        %p295 = pneg %p104
        %p296 = pneg %p101
        %p297 = pneg %p125
        %p298 = pneg %p122
        %p299 = pneg %p146
        %p300 = pneg %p143
        %p301 = pneg %p167
        %p302 = pneg %p164
        %p303 = pneg %p195
        %p304 = pneg %p192
        %s305 = smul.u32 2, %s25
        %p306 = scmp.lt.s32.totalorder %s24, 1
        %s307 = scalar_select %p306, %s24, 1
        %p308 = scmp.lt.s32.totalorder %s305, 1
        %s309 = scalar_select %p308, %s305, 1
        %s310 = smul.addr %s307, 4
        %s311 = sadd.s32 %s309, %s310
        %s312 = smul.addr %s311, 8
        %s313 = scalar_lea.vmem %s6, %s312
        %s314 = smul.u32 2, %s25
        %p315 = scmp.lt.s32.totalorder %s24, 1
        %s316 = scalar_select %p315, %s24, 1
        %p317 = scmp.lt.s32.totalorder %s25, 0
        %s318 = scalar_select %p317, %s25, 0
        %s319 = smul.addr %s318, 8
        %s320 = smul.addr %s316, 8
        %s321 = sadd.s32 %s319, %s320
        %s322 = smul.addr %s321, 8
        %s323 = scalar_lea.vmem %s1, %s322
        %s324 = smul.u32 2, %s25
        %p325 = scmp.lt.s32.totalorder %s24, 1
        %s326 = scalar_select %p325, %s24, 1
        %p327 = scmp.lt.s32.totalorder %s324, 1
        %s328 = scalar_select %p327, %s324, 1
        %s329 = smul.addr %s326, 4
        %s330 = sadd.s32 %s328, %s329
        %s331 = smul.addr %s330, 8
        %s332 = scalar_lea.vmem %s6, %s331
        %s333 = smul.u32 2, %s25
        %v337 = vld [vmem:[%s323] sm:$0xff]
        %v338 = vld [vmem:[%s323 + $0x8] sm:$0xff]
        %v339 = vld [vmem:[%s323 + $0x10] sm:$0xff]
        %v340 = vld [vmem:[%s323 + $0x18] sm:$0xff]
        %v341 = vld [vmem:[%s323 + $0x20] sm:$0xff]
        %v342 = vld [vmem:[%s323 + $0x28] sm:$0xff]
        %v343 = vld [vmem:[%s323 + $0x30] sm:$0xff]
        %v344 = vld [vmem:[%s323 + $0x38] sm:$0xff]
        %v345 = vpack.c.bf16 %v338, %v337
        %v346 = vpack.c.bf16 %v340, %v339
        %v347 = vpack.c.bf16 %v342, %v341
        %v348 = vpack.c.bf16 %v344, %v343
        %vm349 = vcmask 3072
        %350 = vst.msk [vmem:[#allocation2] sm:$0xf] %vm349, 0
        %351 = vst.msk [vmem:[#allocation2 + $0xc] sm:$0xf] %vm349, 0
        %352 = vst.msk [vmem:[#allocation2 + $0x18] sm:$0xf] %vm349, 0
        %353 = vst.msk [vmem:[#allocation2 + $0x24] sm:$0xf] %vm349, 0
        %v356 = vunpack.c.l.b16 %v345
        %v357 = vunpack.c.h.b16 %v345
        %v358 = vunpack.c.l.b16 %v346
        %v359 = vunpack.c.h.b16 %v346
        %v360 = vpack.c.b16 %v356, %v356
        %v361 = vpack.c.b16 %v357, %v357
        %v362 = vpack.c.b16 %v358, %v358
        %v363 = vpack.c.b16 %v359, %v359
        %364 = vrot.lane.b32.xlu0 %v360, 1
        %v365 = vpop.permute.xlu0 %364
        %366 = vrot.lane.b32.xlu0 %v361, 1
        %v367 = vpop.permute.xlu0 %366
        %368 = vrot.lane.b32.xlu0 %v362, 1
        %v369 = vpop.permute.xlu0 %368
        %370 = vrot.lane.b32.xlu0 %v363, 1
        %v371 = vpop.permute.xlu0 %370
        %vm376 = vcmask 134152
        %377 = vst.msk [vmem:[#allocation2] sm:$0xf] %vm376, %v365
        %378 = vst.msk [vmem:[#allocation2 + $0xc] sm:$0xf] %vm376, %v367
        %379 = vst.msk [vmem:[#allocation2 + $0x18] sm:$0xf] %vm376, %v369
        %380 = vst.msk [vmem:[#allocation2 + $0x24] sm:$0xf] %vm376, %v371
        %v381 = vld [vmem:[%s272] sm:$0xff]
        %v382 = vld [vmem:[%s272 + $0x8] sm:$0xff]
        %v383 = vld [vmem:[%s272 + $0x10] sm:$0xff]
        %v384 = vld [vmem:[%s272 + $0x18] sm:$0xff]
        %v385 = vld [vmem:[%s272 + $0x20] sm:$0xff]
        %v386 = vld [vmem:[%s272 + $0x28] sm:$0xff]
        %v387 = vld [vmem:[%s272 + $0x30] sm:$0xff]
        %v388 = vld [vmem:[%s272 + $0x38] sm:$0xff]
        %v389 = vpack.c.bf16 %v383, %v381
        %v390 = vpack.c.bf16 %v384, %v382
        %v391 = vpack.c.bf16 %v387, %v385
        %v392 = vpack.c.bf16 %v388, %v386
        %v397 = vunpack.c.l.b16 %v389
        %v398 = vunpack.c.l.b16 %v390
        %v399 = vunpack.c.h.b16 %v389
        %v400 = vunpack.c.h.b16 %v390
        %v401 = vunpack.c.l.b16 %v391
        %v402 = vunpack.c.l.b16 %v392
        %v403 = vunpack.c.h.b16 %v391
        %v404 = vunpack.c.h.b16 %v392
        %v405 = vpack.c.b16 %v398, %v397
        %v406 = vpack.c.b16 %v400, %v399
        %v407 = vpack.c.b16 %v402, %v401
        %v408 = vpack.c.b16 %v404, %v403
        %409 = vrot.lane.b32.xlu0 %v405, 17
        %v410 = vpop.permute.xlu0 %409
        %411 = vrot.lane.b32.xlu0 %v406, 17
        %v412 = vpop.permute.xlu0 %411
        %413 = vrot.lane.b32.xlu0 %v407, 17
        %v414 = vpop.permute.xlu0 %413
        %415 = vrot.lane.b32.xlu0 %v408, 17
        %v416 = vpop.permute.xlu0 %415
        %v417 = vrot.slane %v410, 4
        %v418 = vrot.slane %v412, 4
        %v419 = vrot.slane %v414, 4
        %v420 = vrot.slane %v416, 4
        %vm421 = vcmask 138240
        %v422 = vsel %vm421, %v417, %v410
        %v423 = vsel %vm421, %v418, %v412
        %v424 = vsel %vm421, %v419, %v414
        %v425 = vsel %vm421, %v420, %v416
        %vm434 = vcmask 1043592
        %vm435 = vcmask 1047556
        %vm436 = vmor %vm435, %vm434
        %437 = vst.msk [vmem:[#allocation2] sm:$0xff] %vm436, %v422
        %vm438 = vcmask 134144
        %439 = vst.msk [vmem:[#allocation2 + $0x8] sm:$0xf] %vm438, %v417
        %440 = vst.msk [vmem:[#allocation2 + $0xc] sm:$0xff] %vm436, %v423
        %441 = vst.msk [vmem:[#allocation2 + $0x14] sm:$0xf] %vm438, %v418
        %442 = vst.msk [vmem:[#allocation2 + $0x18] sm:$0xff] %vm436, %v424
        %443 = vst.msk [vmem:[#allocation2 + $0x20] sm:$0xf] %vm438, %v419
        %444 = vst.msk [vmem:[#allocation2 + $0x24] sm:$0xff] %vm436, %v425
        %445 = vst.msk [vmem:[#allocation2 + $0x2c] sm:$0xf] %vm438, %v420
        %v448 = vunpack.c.l.b16 %v347
        %v449 = vunpack.c.h.b16 %v347
        %v450 = vunpack.c.l.b16 %v348
        %v451 = vunpack.c.h.b16 %v348
        %v452 = vpack.c.b16 %v448, %v448
        %v453 = vpack.c.b16 %v449, %v449
        %v454 = vpack.c.b16 %v450, %v450
        %v455 = vpack.c.b16 %v451, %v451
        %456 = vrot.lane.b32.xlu0 %v452, 17
        %v457 = vpop.permute.xlu0 %456
        %458 = vrot.lane.b32.xlu0 %v453, 17
        %v459 = vpop.permute.xlu0 %458
        %460 = vrot.lane.b32.xlu0 %v454, 17
        %v461 = vpop.permute.xlu0 %460
        %462 = vrot.lane.b32.xlu0 %v455, 17
        %v463 = vpop.permute.xlu0 %462
        %vm468 = vcmask 265352
        %469 = vst.msk [vmem:[#allocation2 + $0x8] sm:$0xf] %vm468, %v457
        %470 = vst.msk [vmem:[#allocation2 + $0x14] sm:$0xf] %vm468, %v459
        %471 = vst.msk [vmem:[#allocation2 + $0x20] sm:$0xf] %vm468, %v461
        %472 = vst.msk [vmem:[#allocation2 + $0x2c] sm:$0xf] %vm468, %v463
        %vm473 = vcmask 273672
        %474 = vst.msk [vmem:[#allocation2 + $0x8] sm:$0xf] %vm473, 0
        %475 = vst.msk [vmem:[#allocation2 + $0x14] sm:$0xf] %vm473, 0
        %476 = vst.msk [vmem:[#allocation2 + $0x20] sm:$0xf] %vm473, 0
        %477 = vst.msk [vmem:[#allocation2 + $0x2c] sm:$0xf] %vm473, 0
        %v478 = vlaneseq
        %v479 = vand.u32 %v478, 127
        %v480 = vadd.s32 %v479, 128
        %vm481 = vcmp.lt.s32.totalorder %v479, 0
        %v482 = vsub.s32 0, %v479
        %v483 = vsel %vm481, %v482, %v479
        %v484 = vshrl.u32 %v483, 4
        %v485 = vand.u32 %v483, 15
        %v486 = vsub.s32 0, %v485
        %v487 = vsel %vm481, %v486, %v485
        %vm488 = vcmp.lt.s32.totalorder %v480, 0
        %v489 = vsub.s32 0, %v480
        %v490 = vsel %vm488, %v489, %v480
        %v491 = vshrl.u32 %v490, 4
        %v492 = vand.u32 %v490, 15
        %v493 = vsub.s32 0, %v492
        %v494 = vsel %vm488, %v493, %v492
        %vm495 = vcmp.ne.s32.totalorder %v487, 0
        %vm496 = vcmp.ne.s32.totalorder %v494, 0
        %vm497 = vcmp.lt.s32.totalorder %v487, 0
        %vm498 = vcmp.lt.s32.totalorder %v494, 0
        %vm499 = vmand %vm497, %vm495
        %vm500 = vmand %vm498, %vm496
        %v501 = vadd.s32 %v487, 16
        %v502 = vadd.s32 %v494, 16
        %v503 = vsel %vm499, %v501, %v487
        %v504 = vsel %vm500, %v502, %v494
        %vm505 = vcmp.ne.s32.totalorder %v503, 0
        %vm506 = vcmp.ne.s32.totalorder %v504, 0
        %vm507 = vcmp.ne.s32.totalorder %v503, 15
        %vm508 = vcmp.ne.s32.totalorder %v504, 15
        %v509 = vld [vmem:[#allocation2] sm:$0xff]
        %v510 = vld [vmem:[#allocation2 + $0xc] sm:$0xff]
        %v511 = vld [vmem:[#allocation2 + $0x18] sm:$0xff]
        %v512 = vld [vmem:[#allocation2 + $0x24] sm:$0xff]
        %v513 = vsel %vm505, 1, 0
        %v514 = vsel %vm506, 1, 0
        %vm515 = vcmp.eq.s32.totalorder %v513, 1
        %vm516 = vcmp.eq.s32.totalorder %v514, 1
        %vm517 = vmpackc.low %vm516, %vm515
        %v518 = vsel %vm517, %v509, 0
        %v519 = vsel %vm517, %v510, 0
        %v520 = vsel %vm517, %v511, 0
        %v521 = vsel %vm517, %v512, 0
        %v522 = vld [vmem:[%s2] sm:$0xf]
        %v523 = vld [vmem:[%s2 + $0x4] sm:$0xf]
        %v524 = vld [vmem:[%s2 + $0x8] sm:$0xf]
        %v525 = vld [vmem:[%s2 + $0xc] sm:$0xf]
        %v526 = vld [vmem:[#allocation2 + $0x8] sm:$0xf]
        %v527 = vld [vmem:[#allocation2 + $0x14] sm:$0xf]
        %v528 = vld [vmem:[#allocation2 + $0x20] sm:$0xf]
        %v529 = vld [vmem:[#allocation2 + $0x2c] sm:$0xf]
        %s530 = scalar_lea.vmem %s2, 16
        %v531 = vld [vmem:[%s530] sm:$0xf]
        %v532 = vld [vmem:[%s530 + $0x4] sm:$0xf]
        %v533 = vld [vmem:[%s530 + $0x8] sm:$0xf]
        %v534 = vld [vmem:[%s530 + $0xc] sm:$0xf]
        %v539 = vunpack.c.l.b16 %v531
        %v540 = vunpack.c.l.b16 %v532
        %v541 = vunpack.c.l.b16 %v533
        %v542 = vunpack.c.l.b16 %v534
        %v543 = vpack.c.b16 %v540, %v539
        %v544 = vpack.c.b16 %v542, %v541
        %v553 = vunpack.c.l.b16 %v509
        %v554 = vunpack.c.h.b16 %v509
        %v555 = vunpack.c.l.b16 %v526
        %v556 = vunpack.c.l.b16 %v510
        %v557 = vunpack.c.h.b16 %v510
        %v558 = vunpack.c.l.b16 %v527
        %v559 = vunpack.c.l.b16 %v511
        %v560 = vunpack.c.h.b16 %v511
        %v561 = vunpack.c.l.b16 %v528
        %v562 = vunpack.c.l.b16 %v512
        %v563 = vunpack.c.h.b16 %v512
        %v564 = vunpack.c.l.b16 %v529
        %v565 = vpack.c.b16 %v556, %v553
        %v566 = vpack.c.b16 %v557, %v554
        %v567 = vpack.c.b16 %v558, %v555
        %v568 = vpack.c.b16 %v562, %v559
        %v569 = vpack.c.b16 %v563, %v560
        %v570 = vpack.c.b16 %v564, %v561
        %571 = vrot.lane.b32.xlu0 %v565, 127
        %v572 = vpop.permute.xlu0 %571
        %573 = vrot.lane.b32.xlu0 %v566, 127
        %v574 = vpop.permute.xlu0 %573
        %575 = vrot.lane.b32.xlu0 %v567, 127
        %v576 = vpop.permute.xlu0 %575
        %577 = vrot.lane.b32.xlu0 %v568, 127
        %v578 = vpop.permute.xlu0 %577
        %579 = vrot.lane.b32.xlu0 %v569, 127
        %v580 = vpop.permute.xlu0 %579
        %581 = vrot.lane.b32.xlu0 %v570, 127
        %v582 = vpop.permute.xlu0 %581
        %vm583 = vcmask 1039360
        %v584 = vsel %vm583, %v572, %v574
        %v585 = vsel %vm583, %v574, %v576
        %v586 = vsel %vm583, %v578, %v580
        %v587 = vsel %vm583, %v580, %v582
        %vm592 = vcmask 261120
        %v594 = vsel %vm592, %v543, 0
        %v597 = vsel %vm592, %v544, 0
        %599 = vmatprep.subr.bf16.mxu0 0
        %600 = vmatpush1.bf16.msra.mxu0 0
        %601 = vmatprep.subr.bf16.mxu0 0
        %602 = vmatpush1.bf16.msra.mxu0 0
        %603 = vmatprep.subr.bf16.mxu0 0
        %604 = vmatpush1.bf16.msra.mxu0 0
        %605 = vmatprep.subr.bf16.mxu0 0
        %606 = vmatpush1.bf16.msra.mxu0 0
        %607 = vmatprep.subr.bf16.mxu0 0
        %608 = vmatpush1.bf16.msra.mxu0 0
        %609 = vmatprep.subr.bf16.mxu0 0
        %610 = vmatpush1.bf16.msra.mxu0 0
        %611 = vmatprep.subr.bf16.mxu0 %v587
        %612 = vmatpush1.bf16.msra.mxu0 %v586
        %613 = vmatprep.subr.bf16.mxu0 %v585
        %614 = vmatpush1.bf16.msra.mxu0 %v584
        %615 = vmatprep.subr.bf16.mxu0 0
        %616 = vmatpush2.bf16.msra.mxu0 0
        %617 = vmatprep.subr.bf16.mxu0 0
        %618 = vmatpush2.bf16.msra.mxu0 0
        %619 = vmatprep.subr.bf16.mxu0 0
        %620 = vmatpush2.bf16.msra.mxu0 0
        %621 = vmatprep.subr.bf16.mxu0 0
        %622 = vmatpush2.bf16.msra.mxu0 0
        %623 = vmatprep.subr.bf16.mxu0 0
        %624 = vmatpush2.bf16.msra.mxu0 0
        %625 = vmatprep.subr.bf16.mxu0 0
        %626 = vmatpush2.bf16.msra.mxu0 0
        %627 = vmatprep.subr.bf16.mxu0 0
        %628 = vmatpush2.bf16.msra.mxu0 0
        %629 = vmatprep.subr.bf16.mxu0 0
        %630 = vmatpush2.bf16.msra.mxu0 0
        %631 = vmatprep.mubr.bf16.mxu0 0
        %632 = vmatmul.mubr.bf16.gmra.mxu0 %v594
        %v633 = vpop.f32.mrf.mxu0
        %v634 = vadd.f32 0.0, %v633
        %v635 = vpop.f32.mrf.mxu0
        %v636 = vadd.f32 0.0, %v635
        %v637 = vpop.f32.mrf.mxu0
        %v638 = vadd.f32 0.0, %v637
        %v639 = vpop.f32.mrf.mxu0
        %v640 = vadd.f32 0.0, %v639
        %641 = vmatprep.mubr.bf16.mxu0 0
        %642 = vmatmul.mubr.bf16.gmra.mxu0 %v597
        %v643 = vpop.f32.mrf.mxu0
        %v644 = vadd.f32 0.0, %v643
        %v645 = vpop.f32.mrf.mxu0
        %v646 = vadd.f32 0.0, %v645
        %v647 = vpop.f32.mrf.mxu0
        %v648 = vadd.f32 0.0, %v647
        %v649 = vpop.f32.mrf.mxu0
        %v650 = vadd.f32 0.0, %v649
        %651 = vdwg.mxu0
        %v656 = vunpack.c.l.b16 %v522
        %v657 = vunpack.c.l.b16 %v523
        %v658 = vunpack.c.l.b16 %v524
        %v659 = vunpack.c.l.b16 %v525
        %v660 = vpack.c.b16 %v657, %v656
        %v661 = vpack.c.b16 %v659, %v658
        %v666 = vunpack.c.l.b16 %v518
        %v667 = vunpack.c.h.b16 %v518
        %v668 = vunpack.c.l.b16 %v519
        %v669 = vunpack.c.h.b16 %v519
        %v670 = vunpack.c.l.b16 %v520
        %v671 = vunpack.c.h.b16 %v520
        %v672 = vunpack.c.l.b16 %v521
        %v673 = vunpack.c.h.b16 %v521
        %v674 = vpack.c.b16 %v668, %v666
        %v675 = vpack.c.b16 %v669, %v667
        %v676 = vpack.c.b16 %v672, %v670
        %v677 = vpack.c.b16 %v673, %v671
        %v683 = vsel %vm592, %v660, 0
        %v686 = vsel %vm592, %v661, 0
        %688 = vmatprep.subr.bf16.mxu0 0
        %689 = vmatpush1.bf16.msra.mxu0 0
        %690 = vmatprep.subr.bf16.mxu0 0
        %691 = vmatpush1.bf16.msra.mxu0 0
        %692 = vmatprep.subr.bf16.mxu0 0
        %693 = vmatpush1.bf16.msra.mxu0 0
        %694 = vmatprep.subr.bf16.mxu0 0
        %695 = vmatpush1.bf16.msra.mxu0 0
        %696 = vmatprep.subr.bf16.mxu0 0
        %697 = vmatpush1.bf16.msra.mxu0 0
        %698 = vmatprep.subr.bf16.mxu0 0
        %699 = vmatpush1.bf16.msra.mxu0 0
        %700 = vmatprep.subr.bf16.mxu0 %v677
        %701 = vmatpush1.bf16.msra.mxu0 %v676
        %702 = vmatprep.subr.bf16.mxu0 %v675
        %703 = vmatpush1.bf16.msra.mxu0 %v674
        %704 = vmatprep.subr.bf16.mxu0 0
        %705 = vmatpush2.bf16.msra.mxu0 0
        %706 = vmatprep.subr.bf16.mxu0 0
        %707 = vmatpush2.bf16.msra.mxu0 0
        %708 = vmatprep.subr.bf16.mxu0 0
        %709 = vmatpush2.bf16.msra.mxu0 0
        %710 = vmatprep.subr.bf16.mxu0 0
        %711 = vmatpush2.bf16.msra.mxu0 0
        %712 = vmatprep.subr.bf16.mxu0 0
        %713 = vmatpush2.bf16.msra.mxu0 0
        %714 = vmatprep.subr.bf16.mxu0 0
        %715 = vmatpush2.bf16.msra.mxu0 0
        %716 = vmatprep.subr.bf16.mxu0 0
        %717 = vmatpush2.bf16.msra.mxu0 0
        %718 = vmatprep.subr.bf16.mxu0 0
        %719 = vmatpush2.bf16.msra.mxu0 0
        %720 = vmatprep.mubr.bf16.mxu0 0
        %721 = vmatmul.mubr.bf16.gmra.mxu0 %v683
        %v722 = vpop.f32.mrf.mxu0
        %v723 = vadd.f32 %v634, %v722
        %v724 = vpop.f32.mrf.mxu0
        %v725 = vadd.f32 %v636, %v724
        %v726 = vpop.f32.mrf.mxu0
        %v727 = vadd.f32 %v638, %v726
        %v728 = vpop.f32.mrf.mxu0
        %v729 = vadd.f32 %v640, %v728
        %730 = vmatprep.mubr.bf16.mxu0 0
        %731 = vmatmul.mubr.bf16.gmra.mxu0 %v686
        %v732 = vpop.f32.mrf.mxu0
        %v733 = vadd.f32 %v644, %v732
        %v734 = vpop.f32.mrf.mxu0
        %v735 = vadd.f32 %v646, %v734
        %v736 = vpop.f32.mrf.mxu0
        %v737 = vadd.f32 %v648, %v736
        %v738 = vpop.f32.mrf.mxu0
        %v739 = vadd.f32 %v650, %v738
        %740 = vdwg.mxu0
        %v741 = vsel %vm507, 1, 0
        %v742 = vsel %vm508, 1, 0
        %vm743 = vcmp.eq.s32.totalorder %v741, 1
        %vm744 = vcmp.eq.s32.totalorder %v742, 1
        %vm745 = vmpackc.low %vm744, %vm743
        %v746 = vsel %vm745, 65537, 0
        %747 = vrot.lane.b32.xlu0 %v746, 2
        %v748 = vpop.permute.xlu0 %747
        %v749 = vrot.slane %v748, 4
        %vm750 = vcmask 15360
        %v751 = vsel %vm750, %v749, %v748
        %vm752 = vcmp.ne.s16.totalorder %v751, 0
        %vm753 = vcmp.ne.s16.totalorder %v749, 0
        %v754 = vsel %vm752, %v509, 0
        %v755 = vsel %vm753, %v526, 0
        %v756 = vsel %vm752, %v510, 0
        %v757 = vsel %vm753, %v527, 0
        %v758 = vsel %vm752, %v511, 0
        %v759 = vsel %vm753, %v528, 0
        %v760 = vsel %vm752, %v512, 0
        %v761 = vsel %vm753, %v529, 0
        %s762 = scalar_lea.vmem %s2, 32
        %v763 = vld [vmem:[%s762] sm:$0xf]
        %v764 = vld [vmem:[%s762 + $0x4] sm:$0xf]
        %v765 = vld [vmem:[%s762 + $0x8] sm:$0xf]
        %v766 = vld [vmem:[%s762 + $0xc] sm:$0xf]
        %v771 = vunpack.c.l.b16 %v763
        %v772 = vunpack.c.l.b16 %v764
        %v773 = vunpack.c.l.b16 %v765
        %v774 = vunpack.c.l.b16 %v766
        %v775 = vpack.c.b16 %v772, %v771
        %v776 = vpack.c.b16 %v774, %v773
        %v785 = vunpack.c.l.b16 %v754
        %v786 = vunpack.c.h.b16 %v754
        %v787 = vunpack.c.l.b16 %v755
        %v788 = vunpack.c.l.b16 %v756
        %v789 = vunpack.c.h.b16 %v756
        %v790 = vunpack.c.l.b16 %v757
        %v791 = vunpack.c.l.b16 %v758
        %v792 = vunpack.c.h.b16 %v758
        %v793 = vunpack.c.l.b16 %v759
        %v794 = vunpack.c.l.b16 %v760
        %v795 = vunpack.c.h.b16 %v760
        %v796 = vunpack.c.l.b16 %v761
        %v797 = vpack.c.b16 %v788, %v785
        %v798 = vpack.c.b16 %v789, %v786
        %v799 = vpack.c.b16 %v790, %v787
        %v800 = vpack.c.b16 %v794, %v791
        %v801 = vpack.c.b16 %v795, %v792
        %v802 = vpack.c.b16 %v796, %v793
        %803 = vrot.lane.b32.xlu0 %v797, 126
        %v804 = vpop.permute.xlu0 %803
        %805 = vrot.lane.b32.xlu0 %v798, 126
        %v806 = vpop.permute.xlu0 %805
        %807 = vrot.lane.b32.xlu0 %v799, 126
        %v808 = vpop.permute.xlu0 %807
        %809 = vrot.lane.b32.xlu0 %v800, 126
        %v810 = vpop.permute.xlu0 %809
        %811 = vrot.lane.b32.xlu0 %v801, 126
        %v812 = vpop.permute.xlu0 %811
        %813 = vrot.lane.b32.xlu0 %v802, 126
        %v814 = vpop.permute.xlu0 %813
        %vm815 = vcmask 1031168
        %v816 = vsel %vm815, %v804, %v806
        %v817 = vsel %vm815, %v806, %v808
        %v818 = vsel %vm815, %v810, %v812
        %v819 = vsel %vm815, %v812, %v814
        %v825 = vsel %vm592, %v775, 0
        %v828 = vsel %vm592, %v776, 0
        %830 = vmatprep.subr.bf16.mxu0 0
        %831 = vmatpush1.bf16.msra.mxu0 0
        %832 = vmatprep.subr.bf16.mxu0 0
        %833 = vmatpush1.bf16.msra.mxu0 0
        %834 = vmatprep.subr.bf16.mxu0 0
        %835 = vmatpush1.bf16.msra.mxu0 0
        %836 = vmatprep.subr.bf16.mxu0 0
        %837 = vmatpush1.bf16.msra.mxu0 0
        %838 = vmatprep.subr.bf16.mxu0 0
        %839 = vmatpush1.bf16.msra.mxu0 0
        %840 = vmatprep.subr.bf16.mxu0 0
        %841 = vmatpush1.bf16.msra.mxu0 0
        %842 = vmatprep.subr.bf16.mxu0 %v819
        %843 = vmatpush1.bf16.msra.mxu0 %v818
        %844 = vmatprep.subr.bf16.mxu0 %v817
        %845 = vmatpush1.bf16.msra.mxu0 %v816
        %846 = vmatprep.subr.bf16.mxu0 0
        %847 = vmatpush2.bf16.msra.mxu0 0
        %848 = vmatprep.subr.bf16.mxu0 0
        %849 = vmatpush2.bf16.msra.mxu0 0
        %850 = vmatprep.subr.bf16.mxu0 0
        %851 = vmatpush2.bf16.msra.mxu0 0
        %852 = vmatprep.subr.bf16.mxu0 0
        %853 = vmatpush2.bf16.msra.mxu0 0
        %854 = vmatprep.subr.bf16.mxu0 0
        %855 = vmatpush2.bf16.msra.mxu0 0
        %856 = vmatprep.subr.bf16.mxu0 0
        %857 = vmatpush2.bf16.msra.mxu0 0
        %858 = vmatprep.subr.bf16.mxu0 0
        %859 = vmatpush2.bf16.msra.mxu0 0
        %860 = vmatprep.subr.bf16.mxu0 0
        %861 = vmatpush2.bf16.msra.mxu0 0
        %862 = vmatprep.mubr.bf16.mxu0 0
        %863 = vmatmul.mubr.bf16.gmra.mxu0 %v825
        %v864 = vpop.f32.mrf.mxu0
        %v865 = vadd.f32 0.0, %v864
        %v866 = vpop.f32.mrf.mxu0
        %v867 = vadd.f32 0.0, %v866
        %v868 = vpop.f32.mrf.mxu0
        %v869 = vadd.f32 0.0, %v868
        %v870 = vpop.f32.mrf.mxu0
        %v871 = vadd.f32 0.0, %v870
        %872 = vmatprep.mubr.bf16.mxu0 0
        %873 = vmatmul.mubr.bf16.gmra.mxu0 %v828
        %v874 = vpop.f32.mrf.mxu0
        %v875 = vadd.f32 0.0, %v874
        %v876 = vpop.f32.mrf.mxu0
        %v877 = vadd.f32 0.0, %v876
        %v878 = vpop.f32.mrf.mxu0
        %v879 = vadd.f32 0.0, %v878
        %v880 = vpop.f32.mrf.mxu0
        %v881 = vadd.f32 0.0, %v880
        %882 = vdwg.mxu0
        %v883 = vadd.f32 %v723, %v865
        %v884 = vadd.f32 %v725, %v867
        %v885 = vadd.f32 %v727, %v869
        %v886 = vadd.f32 %v729, %v871
        %v887 = vadd.f32 %v733, %v875
        %v888 = vadd.f32 %v735, %v877
        %v889 = vadd.f32 %v737, %v879
        %v890 = vadd.f32 %v739, %v881
        %v891 = vsel %vm517, 65537, 0
        %892 = vrot.lane.b32.xlu0 %v891, 16
        %v893 = vpop.permute.xlu0 %892
        %v894 = vrot.slane %v893, 4
        %vm895 = vcmask 130048
        %v896 = vsel %vm895, %v894, %v893
        %vm897 = vcmp.ne.s16.totalorder %v896, 0
        %vm898 = vcmp.ne.s16.totalorder %v894, 0
        %v899 = vsel %vm897, %v509, 0
        %v900 = vsel %vm898, %v526, 0
        %v901 = vsel %vm897, %v510, 0
        %v902 = vsel %vm898, %v527, 0
        %v903 = vsel %vm897, %v511, 0
        %v904 = vsel %vm898, %v528, 0
        %v905 = vsel %vm897, %v512, 0
        %v906 = vsel %vm898, %v529, 0
        %s907 = scalar_lea.vmem %s2, 48
        %v908 = vld [vmem:[%s907] sm:$0xf]
        %v909 = vld [vmem:[%s907 + $0x4] sm:$0xf]
        %v910 = vld [vmem:[%s907 + $0x8] sm:$0xf]
        %v911 = vld [vmem:[%s907 + $0xc] sm:$0xf]
        %v916 = vunpack.c.l.b16 %v908
        %v917 = vunpack.c.l.b16 %v909
        %v918 = vunpack.c.l.b16 %v910
        %v919 = vunpack.c.l.b16 %v911
        %v920 = vpack.c.b16 %v917, %v916
        %v921 = vpack.c.b16 %v919, %v918
        %v930 = vunpack.c.l.b16 %v899
        %v931 = vunpack.c.h.b16 %v899
        %v932 = vunpack.c.l.b16 %v900
        %v933 = vunpack.c.l.b16 %v901
        %v934 = vunpack.c.h.b16 %v901
        %v935 = vunpack.c.l.b16 %v902
        %v936 = vunpack.c.l.b16 %v903
        %v937 = vunpack.c.h.b16 %v903
        %v938 = vunpack.c.l.b16 %v904
        %v939 = vunpack.c.l.b16 %v905
        %v940 = vunpack.c.h.b16 %v905
        %v941 = vunpack.c.l.b16 %v906
        %v942 = vpack.c.b16 %v933, %v930
        %v943 = vpack.c.b16 %v934, %v931
        %v944 = vpack.c.b16 %v935, %v932
        %v945 = vpack.c.b16 %v939, %v936
        %v946 = vpack.c.b16 %v940, %v937
        %v947 = vpack.c.b16 %v941, %v938
        %948 = vrot.lane.b32.xlu0 %v942, 112
        %v949 = vpop.permute.xlu0 %948
        %950 = vrot.lane.b32.xlu0 %v943, 112
        %v951 = vpop.permute.xlu0 %950
        %952 = vrot.lane.b32.xlu0 %v944, 112
        %v953 = vpop.permute.xlu0 %952
        %954 = vrot.lane.b32.xlu0 %v945, 112
        %v955 = vpop.permute.xlu0 %954
        %956 = vrot.lane.b32.xlu0 %v946, 112
        %v957 = vpop.permute.xlu0 %956
        %958 = vrot.lane.b32.xlu0 %v947, 112
        %v959 = vpop.permute.xlu0 %958
        %vm960 = vcmask 916480
        %v961 = vsel %vm960, %v949, %v951
        %v962 = vsel %vm960, %v951, %v953
        %v963 = vsel %vm960, %v955, %v957
        %v964 = vsel %vm960, %v957, %v959
        %v970 = vsel %vm592, %v920, 0
        %v973 = vsel %vm592, %v921, 0
        %975 = vmatprep.subr.bf16.mxu0 0
        %976 = vmatpush1.bf16.msra.mxu0 0
        %977 = vmatprep.subr.bf16.mxu0 0
        %978 = vmatpush1.bf16.msra.mxu0 0
        %979 = vmatprep.subr.bf16.mxu0 0
        %980 = vmatpush1.bf16.msra.mxu0 0
        %981 = vmatprep.subr.bf16.mxu0 0
        %982 = vmatpush1.bf16.msra.mxu0 0
        %983 = vmatprep.subr.bf16.mxu0 0
        %984 = vmatpush1.bf16.msra.mxu0 0
        %985 = vmatprep.subr.bf16.mxu0 0
        %986 = vmatpush1.bf16.msra.mxu0 0
        %987 = vmatprep.subr.bf16.mxu0 %v964
        %988 = vmatpush1.bf16.msra.mxu0 %v963
        %989 = vmatprep.subr.bf16.mxu0 %v962
        %990 = vmatpush1.bf16.msra.mxu0 %v961
        %991 = vmatprep.subr.bf16.mxu0 0
        %992 = vmatpush2.bf16.msra.mxu0 0
        %993 = vmatprep.subr.bf16.mxu0 0
        %994 = vmatpush2.bf16.msra.mxu0 0
        %995 = vmatprep.subr.bf16.mxu0 0
        %996 = vmatpush2.bf16.msra.mxu0 0
        %997 = vmatprep.subr.bf16.mxu0 0
        %998 = vmatpush2.bf16.msra.mxu0 0
        %999 = vmatprep.subr.bf16.mxu0 0
        %1000 = vmatpush2.bf16.msra.mxu0 0
        %1001 = vmatprep.subr.bf16.mxu0 0
        %1002 = vmatpush2.bf16.msra.mxu0 0
        %1003 = vmatprep.subr.bf16.mxu0 0
        %1004 = vmatpush2.bf16.msra.mxu0 0
        %1005 = vmatprep.subr.bf16.mxu0 0
        %1006 = vmatpush2.bf16.msra.mxu0 0
        %1007 = vmatprep.mubr.bf16.mxu0 0
        %1008 = vmatmul.mubr.bf16.gmra.mxu0 %v970
        %v1009 = vpop.f32.mrf.mxu0
        %v1010 = vadd.f32 0.0, %v1009
        %v1011 = vpop.f32.mrf.mxu0
        %v1012 = vadd.f32 0.0, %v1011
        %v1013 = vpop.f32.mrf.mxu0
        %v1014 = vadd.f32 0.0, %v1013
        %v1015 = vpop.f32.mrf.mxu0
        %v1016 = vadd.f32 0.0, %v1015
        %1017 = vmatprep.mubr.bf16.mxu0 0
        %1018 = vmatmul.mubr.bf16.gmra.mxu0 %v973
        %v1019 = vpop.f32.mrf.mxu0
        %v1020 = vadd.f32 0.0, %v1019
        %v1021 = vpop.f32.mrf.mxu0
        %v1022 = vadd.f32 0.0, %v1021
        %v1023 = vpop.f32.mrf.mxu0
        %v1024 = vadd.f32 0.0, %v1023
        %v1025 = vpop.f32.mrf.mxu0
        %v1026 = vadd.f32 0.0, %v1025
        %1027 = vdwg.mxu0
        %v1028 = vadd.f32 %v883, %v1010
        %v1029 = vadd.f32 %v884, %v1012
        %v1030 = vadd.f32 %v885, %v1014
        %v1031 = vadd.f32 %v886, %v1016
        %v1032 = vadd.f32 %v887, %v1020
        %v1033 = vadd.f32 %v888, %v1022
        %v1034 = vadd.f32 %v889, %v1024
        %v1035 = vadd.f32 %v890, %v1026
        %s1036 = scalar_lea.vmem %s2, 64
        %v1037 = vld [vmem:[%s1036] sm:$0xf]
        %v1038 = vld [vmem:[%s1036 + $0x4] sm:$0xf]
        %v1039 = vld [vmem:[%s1036 + $0x8] sm:$0xf]
        %v1040 = vld [vmem:[%s1036 + $0xc] sm:$0xf]
        %v1045 = vunpack.c.l.b16 %v1037
        %v1046 = vunpack.c.l.b16 %v1038
        %v1047 = vunpack.c.l.b16 %v1039
        %v1048 = vunpack.c.l.b16 %v1040
        %v1049 = vpack.c.b16 %v1046, %v1045
        %v1050 = vpack.c.b16 %v1048, %v1047
        %1051 = vrot.lane.b32.xlu0 %v565, 111
        %v1052 = vpop.permute.xlu0 %1051
        %1053 = vrot.lane.b32.xlu0 %v566, 111
        %v1054 = vpop.permute.xlu0 %1053
        %1055 = vrot.lane.b32.xlu0 %v567, 111
        %v1056 = vpop.permute.xlu0 %1055
        %1057 = vrot.lane.b32.xlu0 %v568, 111
        %v1058 = vpop.permute.xlu0 %1057
        %1059 = vrot.lane.b32.xlu0 %v569, 111
        %v1060 = vpop.permute.xlu0 %1059
        %1061 = vrot.lane.b32.xlu0 %v570, 111
        %v1062 = vpop.permute.xlu0 %1061
        %vm1063 = vcmask 908288
        %v1064 = vsel %vm1063, %v1052, %v1054
        %v1065 = vsel %vm1063, %v1054, %v1056
        %v1066 = vsel %vm1063, %v1058, %v1060
        %v1067 = vsel %vm1063, %v1060, %v1062
        %v1073 = vsel %vm592, %v1049, 0
        %v1076 = vsel %vm592, %v1050, 0
        %1078 = vmatprep.subr.bf16.mxu0 0
        %1079 = vmatpush1.bf16.msra.mxu0 0
        %1080 = vmatprep.subr.bf16.mxu0 0
        %1081 = vmatpush1.bf16.msra.mxu0 0
        %1082 = vmatprep.subr.bf16.mxu0 0
        %1083 = vmatpush1.bf16.msra.mxu0 0
        %1084 = vmatprep.subr.bf16.mxu0 0
        %1085 = vmatpush1.bf16.msra.mxu0 0
        %1086 = vmatprep.subr.bf16.mxu0 0
        %1087 = vmatpush1.bf16.msra.mxu0 0
        %1088 = vmatprep.subr.bf16.mxu0 0
        %1089 = vmatpush1.bf16.msra.mxu0 0
        %1090 = vmatprep.subr.bf16.mxu0 %v1067
        %1091 = vmatpush1.bf16.msra.mxu0 %v1066
        %1092 = vmatprep.subr.bf16.mxu0 %v1065
        %1093 = vmatpush1.bf16.msra.mxu0 %v1064
        %1094 = vmatprep.subr.bf16.mxu0 0
        %1095 = vmatpush2.bf16.msra.mxu0 0
        %1096 = vmatprep.subr.bf16.mxu0 0
        %1097 = vmatpush2.bf16.msra.mxu0 0
        %1098 = vmatprep.subr.bf16.mxu0 0
        %1099 = vmatpush2.bf16.msra.mxu0 0
        %1100 = vmatprep.subr.bf16.mxu0 0
        %1101 = vmatpush2.bf16.msra.mxu0 0
        %1102 = vmatprep.subr.bf16.mxu0 0
        %1103 = vmatpush2.bf16.msra.mxu0 0
        %1104 = vmatprep.subr.bf16.mxu0 0
        %1105 = vmatpush2.bf16.msra.mxu0 0
        %1106 = vmatprep.subr.bf16.mxu0 0
        %1107 = vmatpush2.bf16.msra.mxu0 0
        %1108 = vmatprep.subr.bf16.mxu0 0
        %1109 = vmatpush2.bf16.msra.mxu0 0
        %1110 = vmatprep.mubr.bf16.mxu0 0
        %1111 = vmatmul.mubr.bf16.gmra.mxu0 %v1073
        %v1112 = vpop.f32.mrf.mxu0
        %v1113 = vadd.f32 0.0, %v1112
        %v1114 = vpop.f32.mrf.mxu0
        %v1115 = vadd.f32 0.0, %v1114
        %v1116 = vpop.f32.mrf.mxu0
        %v1117 = vadd.f32 0.0, %v1116
        %v1118 = vpop.f32.mrf.mxu0
        %v1119 = vadd.f32 0.0, %v1118
        %1120 = vmatprep.mubr.bf16.mxu0 0
        %1121 = vmatmul.mubr.bf16.gmra.mxu0 %v1076
        %v1122 = vpop.f32.mrf.mxu0
        %v1123 = vadd.f32 0.0, %v1122
        %v1124 = vpop.f32.mrf.mxu0
        %v1125 = vadd.f32 0.0, %v1124
        %v1126 = vpop.f32.mrf.mxu0
        %v1127 = vadd.f32 0.0, %v1126
        %v1128 = vpop.f32.mrf.mxu0
        %v1129 = vadd.f32 0.0, %v1128
        %1130 = vdwg.mxu0
        %v1131 = vadd.f32 %v1028, %v1113
        %v1132 = vadd.f32 %v1029, %v1115
        %v1133 = vadd.f32 %v1030, %v1117
        %v1134 = vadd.f32 %v1031, %v1119
        %v1135 = vadd.f32 %v1032, %v1123
        %v1136 = vadd.f32 %v1033, %v1125
        %v1137 = vadd.f32 %v1034, %v1127
        %v1138 = vadd.f32 %v1035, %v1129
        %1139 = vrot.lane.b32.xlu0 %v746, 18
        %v1140 = vpop.permute.xlu0 %1139
        %v1141 = vrot.slane %v1140, 4
        %vm1142 = vcmask 146432
        %v1143 = vsel %vm1142, %v1141, %v1140
        %vm1144 = vcmp.ne.s16.totalorder %v1143, 0
        %vm1145 = vcmp.ne.s16.totalorder %v1141, 0
        %v1146 = vsel %vm1144, %v509, 0
        %v1147 = vsel %vm1145, %v526, 0
        %v1148 = vsel %vm1144, %v510, 0
        %v1149 = vsel %vm1145, %v527, 0
        %v1150 = vsel %vm1144, %v511, 0
        %v1151 = vsel %vm1145, %v528, 0
        %v1152 = vsel %vm1144, %v512, 0
        %v1153 = vsel %vm1145, %v529, 0
        %s1154 = scalar_lea.vmem %s2, 80
        %v1155 = vld [vmem:[%s1154] sm:$0xf]
        %v1156 = vld [vmem:[%s1154 + $0x4] sm:$0xf]
        %v1157 = vld [vmem:[%s1154 + $0x8] sm:$0xf]
        %v1158 = vld [vmem:[%s1154 + $0xc] sm:$0xf]
        %v1163 = vunpack.c.l.b16 %v1155
        %v1164 = vunpack.c.l.b16 %v1156
        %v1165 = vunpack.c.l.b16 %v1157
        %v1166 = vunpack.c.l.b16 %v1158
        %v1167 = vpack.c.b16 %v1164, %v1163
        %v1168 = vpack.c.b16 %v1166, %v1165
        %v1177 = vunpack.c.l.b16 %v1146
        %v1178 = vunpack.c.h.b16 %v1146
        %v1179 = vunpack.c.l.b16 %v1147
        %v1180 = vunpack.c.l.b16 %v1148
        %v1181 = vunpack.c.h.b16 %v1148
        %v1182 = vunpack.c.l.b16 %v1149
        %v1183 = vunpack.c.l.b16 %v1150
        %v1184 = vunpack.c.h.b16 %v1150
        %v1185 = vunpack.c.l.b16 %v1151
        %v1186 = vunpack.c.l.b16 %v1152
        %v1187 = vunpack.c.h.b16 %v1152
        %v1188 = vunpack.c.l.b16 %v1153
        %v1189 = vpack.c.b16 %v1180, %v1177
        %v1190 = vpack.c.b16 %v1181, %v1178
        %v1191 = vpack.c.b16 %v1182, %v1179
        %v1192 = vpack.c.b16 %v1186, %v1183
        %v1193 = vpack.c.b16 %v1187, %v1184
        %v1194 = vpack.c.b16 %v1188, %v1185
        %1195 = vrot.lane.b32.xlu0 %v1189, 110
        %v1196 = vpop.permute.xlu0 %1195
        %1197 = vrot.lane.b32.xlu0 %v1190, 110
        %v1198 = vpop.permute.xlu0 %1197
        %1199 = vrot.lane.b32.xlu0 %v1191, 110
        %v1200 = vpop.permute.xlu0 %1199
        %1201 = vrot.lane.b32.xlu0 %v1192, 110
        %v1202 = vpop.permute.xlu0 %1201
        %1203 = vrot.lane.b32.xlu0 %v1193, 110
        %v1204 = vpop.permute.xlu0 %1203
        %1205 = vrot.lane.b32.xlu0 %v1194, 110
        %v1206 = vpop.permute.xlu0 %1205
        %vm1207 = vcmask 900096
        %v1208 = vsel %vm1207, %v1196, %v1198
        %v1209 = vsel %vm1207, %v1198, %v1200
        %v1210 = vsel %vm1207, %v1202, %v1204
        %v1211 = vsel %vm1207, %v1204, %v1206
        %v1217 = vsel %vm592, %v1167, 0
        %v1220 = vsel %vm592, %v1168, 0
        %1222 = vmatprep.subr.bf16.mxu0 0
        %1223 = vmatpush1.bf16.msra.mxu0 0
        %1224 = vmatprep.subr.bf16.mxu0 0
        %1225 = vmatpush1.bf16.msra.mxu0 0
        %1226 = vmatprep.subr.bf16.mxu0 0
        %1227 = vmatpush1.bf16.msra.mxu0 0
        %1228 = vmatprep.subr.bf16.mxu0 0
        %1229 = vmatpush1.bf16.msra.mxu0 0
        %1230 = vmatprep.subr.bf16.mxu0 0
        %1231 = vmatpush1.bf16.msra.mxu0 0
        %1232 = vmatprep.subr.bf16.mxu0 0
        %1233 = vmatpush1.bf16.msra.mxu0 0
        %1234 = vmatprep.subr.bf16.mxu0 %v1211
        %1235 = vmatpush1.bf16.msra.mxu0 %v1210
        %1236 = vmatprep.subr.bf16.mxu0 %v1209
        %1237 = vmatpush1.bf16.msra.mxu0 %v1208
        %1238 = vmatprep.subr.bf16.mxu0 0
        %1239 = vmatpush2.bf16.msra.mxu0 0
        %1240 = vmatprep.subr.bf16.mxu0 0
        %1241 = vmatpush2.bf16.msra.mxu0 0
        %1242 = vmatprep.subr.bf16.mxu0 0
        %1243 = vmatpush2.bf16.msra.mxu0 0
        %1244 = vmatprep.subr.bf16.mxu0 0
        %1245 = vmatpush2.bf16.msra.mxu0 0
        %1246 = vmatprep.subr.bf16.mxu0 0
        %1247 = vmatpush2.bf16.msra.mxu0 0
        %1248 = vmatprep.subr.bf16.mxu0 0
        %1249 = vmatpush2.bf16.msra.mxu0 0
        %1250 = vmatprep.subr.bf16.mxu0 0
        %1251 = vmatpush2.bf16.msra.mxu0 0
        %1252 = vmatprep.subr.bf16.mxu0 0
        %1253 = vmatpush2.bf16.msra.mxu0 0
        %1254 = vmatprep.mubr.bf16.mxu0 0
        %1255 = vmatmul.mubr.bf16.gmra.mxu0 %v1217
        %v1256 = vpop.f32.mrf.mxu0
        %v1257 = vadd.f32 0.0, %v1256
        %v1258 = vpop.f32.mrf.mxu0
        %v1259 = vadd.f32 0.0, %v1258
        %v1260 = vpop.f32.mrf.mxu0
        %v1261 = vadd.f32 0.0, %v1260
        %v1262 = vpop.f32.mrf.mxu0
        %v1263 = vadd.f32 0.0, %v1262
        %1264 = vmatprep.mubr.bf16.mxu0 0
        %1265 = vmatmul.mubr.bf16.gmra.mxu0 %v1220
        %v1266 = vpop.f32.mrf.mxu0
        %v1267 = vadd.f32 0.0, %v1266
        %v1268 = vpop.f32.mrf.mxu0
        %v1269 = vadd.f32 0.0, %v1268
        %v1270 = vpop.f32.mrf.mxu0
        %v1271 = vadd.f32 0.0, %v1270
        %v1272 = vpop.f32.mrf.mxu0
        %v1273 = vadd.f32 0.0, %v1272
        %1274 = vdwg.mxu0
        %v1275 = vadd.f32 %v1131, %v1257
        %v1276 = vadd.f32 %v1132, %v1259
        %v1277 = vadd.f32 %v1133, %v1261
        %v1278 = vadd.f32 %v1134, %v1263
        %v1279 = vadd.f32 %v1135, %v1267
        %v1280 = vadd.f32 %v1136, %v1269
        %v1281 = vadd.f32 %v1137, %v1271
        %v1282 = vadd.f32 %v1138, %v1273
        %1283 = vrot.lane.b32.xlu0 %v891, 32
        %v1284 = vpop.permute.xlu0 %1283
        %v1285 = vrot.slane %v1284, 4
        %vm1286 = vcmask 261120
        %v1287 = vsel %vm1286, %v1285, %v1284
        %vm1288 = vcmp.ne.s16.totalorder %v1287, 0
        %vm1289 = vcmp.ne.s16.totalorder %v1285, 0
        %v1290 = vsel %vm1288, %v509, 0
        %v1291 = vsel %vm1289, %v526, 0
        %v1292 = vsel %vm1288, %v510, 0
        %v1293 = vsel %vm1289, %v527, 0
        %v1294 = vsel %vm1288, %v511, 0
        %v1295 = vsel %vm1289, %v528, 0
        %v1296 = vsel %vm1288, %v512, 0
        %v1297 = vsel %vm1289, %v529, 0
        %s1298 = scalar_lea.vmem %s2, 96
        %v1299 = vld [vmem:[%s1298] sm:$0xf]
        %v1300 = vld [vmem:[%s1298 + $0x4] sm:$0xf]
        %v1301 = vld [vmem:[%s1298 + $0x8] sm:$0xf]
        %v1302 = vld [vmem:[%s1298 + $0xc] sm:$0xf]
        %v1307 = vunpack.c.l.b16 %v1299
        %v1308 = vunpack.c.l.b16 %v1300
        %v1309 = vunpack.c.l.b16 %v1301
        %v1310 = vunpack.c.l.b16 %v1302
        %v1311 = vpack.c.b16 %v1308, %v1307
        %v1312 = vpack.c.b16 %v1310, %v1309
        %v1321 = vunpack.c.l.b16 %v1290
        %v1322 = vunpack.c.h.b16 %v1290
        %v1323 = vunpack.c.l.b16 %v1291
        %v1324 = vunpack.c.l.b16 %v1292
        %v1325 = vunpack.c.h.b16 %v1292
        %v1326 = vunpack.c.l.b16 %v1293
        %v1327 = vunpack.c.l.b16 %v1294
        %v1328 = vunpack.c.h.b16 %v1294
        %v1329 = vunpack.c.l.b16 %v1295
        %v1330 = vunpack.c.l.b16 %v1296
        %v1331 = vunpack.c.h.b16 %v1296
        %v1332 = vunpack.c.l.b16 %v1297
        %v1333 = vpack.c.b16 %v1324, %v1321
        %v1334 = vpack.c.b16 %v1325, %v1322
        %v1335 = vpack.c.b16 %v1326, %v1323
        %v1336 = vpack.c.b16 %v1330, %v1327
        %v1337 = vpack.c.b16 %v1331, %v1328
        %v1338 = vpack.c.b16 %v1332, %v1329
        %1339 = vrot.lane.b32.xlu0 %v1333, 96
        %v1340 = vpop.permute.xlu0 %1339
        %1341 = vrot.lane.b32.xlu0 %v1334, 96
        %v1342 = vpop.permute.xlu0 %1341
        %1343 = vrot.lane.b32.xlu0 %v1335, 96
        %v1344 = vpop.permute.xlu0 %1343
        %1345 = vrot.lane.b32.xlu0 %v1336, 96
        %v1346 = vpop.permute.xlu0 %1345
        %1347 = vrot.lane.b32.xlu0 %v1337, 96
        %v1348 = vpop.permute.xlu0 %1347
        %1349 = vrot.lane.b32.xlu0 %v1338, 96
        %v1350 = vpop.permute.xlu0 %1349
        %vm1351 = vcmask 785408
        %v1352 = vsel %vm1351, %v1340, %v1342
        %v1353 = vsel %vm1351, %v1342, %v1344
        %v1354 = vsel %vm1351, %v1346, %v1348
        %v1355 = vsel %vm1351, %v1348, %v1350
        %v1361 = vsel %vm592, %v1311, 0
        %v1364 = vsel %vm592, %v1312, 0
        %1366 = vmatprep.subr.bf16.mxu0 0
        %1367 = vmatpush1.bf16.msra.mxu0 0
        %1368 = vmatprep.subr.bf16.mxu0 0
        %1369 = vmatpush1.bf16.msra.mxu0 0
        %1370 = vmatprep.subr.bf16.mxu0 0
        %1371 = vmatpush1.bf16.msra.mxu0 0
        %1372 = vmatprep.subr.bf16.mxu0 0
        %1373 = vmatpush1.bf16.msra.mxu0 0
        %1374 = vmatprep.subr.bf16.mxu0 0
        %1375 = vmatpush1.bf16.msra.mxu0 0
        %1376 = vmatprep.subr.bf16.mxu0 0
        %1377 = vmatpush1.bf16.msra.mxu0 0
        %1378 = vmatprep.subr.bf16.mxu0 %v1355
        %1379 = vmatpush1.bf16.msra.mxu0 %v1354
        %1380 = vmatprep.subr.bf16.mxu0 %v1353
        %1381 = vmatpush1.bf16.msra.mxu0 %v1352
        %1382 = vmatprep.subr.bf16.mxu0 0
        %1383 = vmatpush2.bf16.msra.mxu0 0
        %1384 = vmatprep.subr.bf16.mxu0 0
        %1385 = vmatpush2.bf16.msra.mxu0 0
        %1386 = vmatprep.subr.bf16.mxu0 0
        %1387 = vmatpush2.bf16.msra.mxu0 0
        %1388 = vmatprep.subr.bf16.mxu0 0
        %1389 = vmatpush2.bf16.msra.mxu0 0
        %1390 = vmatprep.subr.bf16.mxu0 0
        %1391 = vmatpush2.bf16.msra.mxu0 0
        %1392 = vmatprep.subr.bf16.mxu0 0
        %1393 = vmatpush2.bf16.msra.mxu0 0
        %1394 = vmatprep.subr.bf16.mxu0 0
        %1395 = vmatpush2.bf16.msra.mxu0 0
        %1396 = vmatprep.subr.bf16.mxu0 0
        %1397 = vmatpush2.bf16.msra.mxu0 0
        %1398 = vmatprep.mubr.bf16.mxu0 0
        %1399 = vmatmul.mubr.bf16.gmra.mxu0 %v1361
        %v1400 = vpop.f32.mrf.mxu0
        %v1401 = vadd.f32 0.0, %v1400
        %v1402 = vpop.f32.mrf.mxu0
        %v1403 = vadd.f32 0.0, %v1402
        %v1404 = vpop.f32.mrf.mxu0
        %v1405 = vadd.f32 0.0, %v1404
        %v1406 = vpop.f32.mrf.mxu0
        %v1407 = vadd.f32 0.0, %v1406
        %1408 = vmatprep.mubr.bf16.mxu0 0
        %1409 = vmatmul.mubr.bf16.gmra.mxu0 %v1364
        %v1410 = vpop.f32.mrf.mxu0
        %v1411 = vadd.f32 0.0, %v1410
        %v1412 = vpop.f32.mrf.mxu0
        %v1413 = vadd.f32 0.0, %v1412
        %v1414 = vpop.f32.mrf.mxu0
        %v1415 = vadd.f32 0.0, %v1414
        %v1416 = vpop.f32.mrf.mxu0
        %v1417 = vadd.f32 0.0, %v1416
        %1418 = vdwg.mxu0
        %v1419 = vadd.f32 %v1275, %v1401
        %v1420 = vadd.f32 %v1276, %v1403
        %v1421 = vadd.f32 %v1277, %v1405
        %v1422 = vadd.f32 %v1278, %v1407
        %v1423 = vadd.f32 %v1279, %v1411
        %v1424 = vadd.f32 %v1280, %v1413
        %v1425 = vadd.f32 %v1281, %v1415
        %v1426 = vadd.f32 %v1282, %v1417
        %s1427 = scalar_lea.vmem %s2, 112
        %v1428 = vld [vmem:[%s1427] sm:$0xf]
        %v1429 = vld [vmem:[%s1427 + $0x4] sm:$0xf]
        %v1430 = vld [vmem:[%s1427 + $0x8] sm:$0xf]
        %v1431 = vld [vmem:[%s1427 + $0xc] sm:$0xf]
        %v1436 = vunpack.c.l.b16 %v1428
        %v1437 = vunpack.c.l.b16 %v1429
        %v1438 = vunpack.c.l.b16 %v1430
        %v1439 = vunpack.c.l.b16 %v1431
        %v1440 = vpack.c.b16 %v1437, %v1436
        %v1441 = vpack.c.b16 %v1439, %v1438
        %1442 = vrot.lane.b32.xlu0 %v565, 95
        %v1443 = vpop.permute.xlu0 %1442
        %1444 = vrot.lane.b32.xlu0 %v566, 95
        %v1445 = vpop.permute.xlu0 %1444
        %1446 = vrot.lane.b32.xlu0 %v567, 95
        %v1447 = vpop.permute.xlu0 %1446
        %1448 = vrot.lane.b32.xlu0 %v568, 95
        %v1449 = vpop.permute.xlu0 %1448
        %1450 = vrot.lane.b32.xlu0 %v569, 95
        %v1451 = vpop.permute.xlu0 %1450
        %1452 = vrot.lane.b32.xlu0 %v570, 95
        %v1453 = vpop.permute.xlu0 %1452
        %vm1454 = vcmask 777216
        %v1455 = vsel %vm1454, %v1443, %v1445
        %v1456 = vsel %vm1454, %v1445, %v1447
        %v1457 = vsel %vm1454, %v1449, %v1451
        %v1458 = vsel %vm1454, %v1451, %v1453
        %v1464 = vsel %vm592, %v1440, 0
        %v1467 = vsel %vm592, %v1441, 0
        %1469 = vmatprep.subr.bf16.mxu0 0
        %1470 = vmatpush1.bf16.msra.mxu0 0
        %1471 = vmatprep.subr.bf16.mxu0 0
        %1472 = vmatpush1.bf16.msra.mxu0 0
        %1473 = vmatprep.subr.bf16.mxu0 0
        %1474 = vmatpush1.bf16.msra.mxu0 0
        %1475 = vmatprep.subr.bf16.mxu0 0
        %1476 = vmatpush1.bf16.msra.mxu0 0
        %1477 = vmatprep.subr.bf16.mxu0 0
        %1478 = vmatpush1.bf16.msra.mxu0 0
        %1479 = vmatprep.subr.bf16.mxu0 0
        %1480 = vmatpush1.bf16.msra.mxu0 0
        %1481 = vmatprep.subr.bf16.mxu0 %v1458
        %1482 = vmatpush1.bf16.msra.mxu0 %v1457
        %1483 = vmatprep.subr.bf16.mxu0 %v1456
        %1484 = vmatpush1.bf16.msra.mxu0 %v1455
        %1485 = vmatprep.subr.bf16.mxu0 0
        %1486 = vmatpush2.bf16.msra.mxu0 0
        %1487 = vmatprep.subr.bf16.mxu0 0
        %1488 = vmatpush2.bf16.msra.mxu0 0
        %1489 = vmatprep.subr.bf16.mxu0 0
        %1490 = vmatpush2.bf16.msra.mxu0 0
        %1491 = vmatprep.subr.bf16.mxu0 0
        %1492 = vmatpush2.bf16.msra.mxu0 0
        %1493 = vmatprep.subr.bf16.mxu0 0
        %1494 = vmatpush2.bf16.msra.mxu0 0
        %1495 = vmatprep.subr.bf16.mxu0 0
        %1496 = vmatpush2.bf16.msra.mxu0 0
        %1497 = vmatprep.subr.bf16.mxu0 0
        %1498 = vmatpush2.bf16.msra.mxu0 0
        %1499 = vmatprep.subr.bf16.mxu0 0
        %1500 = vmatpush2.bf16.msra.mxu0 0
        %1501 = vmatprep.mubr.bf16.mxu0 0
        %1502 = vmatmul.mubr.bf16.gmra.mxu0 %v1464
        %v1503 = vpop.f32.mrf.mxu0
        %v1504 = vadd.f32 0.0, %v1503
        %v1505 = vpop.f32.mrf.mxu0
        %v1506 = vadd.f32 0.0, %v1505
        %v1507 = vpop.f32.mrf.mxu0
        %v1508 = vadd.f32 0.0, %v1507
        %v1509 = vpop.f32.mrf.mxu0
        %v1510 = vadd.f32 0.0, %v1509
        %1511 = vmatprep.mubr.bf16.mxu0 0
        %1512 = vmatmul.mubr.bf16.gmra.mxu0 %v1467
        %v1513 = vpop.f32.mrf.mxu0
        %v1514 = vadd.f32 0.0, %v1513
        %v1515 = vpop.f32.mrf.mxu0
        %v1516 = vadd.f32 0.0, %v1515
        %v1517 = vpop.f32.mrf.mxu0
        %v1518 = vadd.f32 0.0, %v1517
        %v1519 = vpop.f32.mrf.mxu0
        %v1520 = vadd.f32 0.0, %v1519
        %1521 = vdwg.mxu0
        %v1522 = vadd.f32 %v1419, %v1504
        %v1523 = vadd.f32 %v1420, %v1506
        %v1524 = vadd.f32 %v1421, %v1508
        %v1525 = vadd.f32 %v1422, %v1510
        %v1526 = vadd.f32 %v1423, %v1514
        %v1527 = vadd.f32 %v1424, %v1516
        %v1528 = vadd.f32 %v1425, %v1518
        %v1529 = vadd.f32 %v1426, %v1520
        %1530 = vrot.lane.b32.xlu0 %v746, 34
        %v1531 = vpop.permute.xlu0 %1530
        %v1532 = vrot.slane %v1531, 4
        %vm1533 = vcmask 277504
        %v1534 = vsel %vm1533, %v1532, %v1531
        %vm1535 = vcmp.ne.s16.totalorder %v1534, 0
        %vm1536 = vcmp.ne.s16.totalorder %v1532, 0
        %v1537 = vsel %vm1535, %v509, 0
        %v1538 = vsel %vm1536, %v526, 0
        %v1539 = vsel %vm1535, %v510, 0
        %v1540 = vsel %vm1536, %v527, 0
        %v1541 = vsel %vm1535, %v511, 0
        %v1542 = vsel %vm1536, %v528, 0
        %v1543 = vsel %vm1535, %v512, 0
        %v1544 = vsel %vm1536, %v529, 0
        %s1545 = scalar_lea.vmem %s2, 128
        %v1546 = vld [vmem:[%s1545] sm:$0xf]
        %v1547 = vld [vmem:[%s1545 + $0x4] sm:$0xf]
        %v1548 = vld [vmem:[%s1545 + $0x8] sm:$0xf]
        %v1549 = vld [vmem:[%s1545 + $0xc] sm:$0xf]
        %v1554 = vunpack.c.l.b16 %v1546
        %v1555 = vunpack.c.l.b16 %v1547
        %v1556 = vunpack.c.l.b16 %v1548
        %v1557 = vunpack.c.l.b16 %v1549
        %v1558 = vpack.c.b16 %v1555, %v1554
        %v1559 = vpack.c.b16 %v1557, %v1556
        %v1568 = vunpack.c.l.b16 %v1537
        %v1569 = vunpack.c.h.b16 %v1537
        %v1570 = vunpack.c.l.b16 %v1538
        %v1571 = vunpack.c.l.b16 %v1539
        %v1572 = vunpack.c.h.b16 %v1539
        %v1573 = vunpack.c.l.b16 %v1540
        %v1574 = vunpack.c.l.b16 %v1541
        %v1575 = vunpack.c.h.b16 %v1541
        %v1576 = vunpack.c.l.b16 %v1542
        %v1577 = vunpack.c.l.b16 %v1543
        %v1578 = vunpack.c.h.b16 %v1543
        %v1579 = vunpack.c.l.b16 %v1544
        %v1580 = vpack.c.b16 %v1571, %v1568
        %v1581 = vpack.c.b16 %v1572, %v1569
        %v1582 = vpack.c.b16 %v1573, %v1570
        %v1583 = vpack.c.b16 %v1577, %v1574
        %v1584 = vpack.c.b16 %v1578, %v1575
        %v1585 = vpack.c.b16 %v1579, %v1576
        %1586 = vrot.lane.b32.xlu0 %v1580, 94
        %v1587 = vpop.permute.xlu0 %1586
        %1588 = vrot.lane.b32.xlu0 %v1581, 94
        %v1589 = vpop.permute.xlu0 %1588
        %1590 = vrot.lane.b32.xlu0 %v1582, 94
        %v1591 = vpop.permute.xlu0 %1590
        %1592 = vrot.lane.b32.xlu0 %v1583, 94
        %v1593 = vpop.permute.xlu0 %1592
        %1594 = vrot.lane.b32.xlu0 %v1584, 94
        %v1595 = vpop.permute.xlu0 %1594
        %1596 = vrot.lane.b32.xlu0 %v1585, 94
        %v1597 = vpop.permute.xlu0 %1596
        %vm1598 = vcmask 769024
        %v1599 = vsel %vm1598, %v1587, %v1589
        %v1600 = vsel %vm1598, %v1589, %v1591
        %v1601 = vsel %vm1598, %v1593, %v1595
        %v1602 = vsel %vm1598, %v1595, %v1597
        %v1608 = vsel %vm592, %v1558, 0
        %v1611 = vsel %vm592, %v1559, 0
        %1613 = vmatprep.subr.bf16.mxu0 0
        %1614 = vmatpush1.bf16.msra.mxu0 0
        %1615 = vmatprep.subr.bf16.mxu0 0
        %1616 = vmatpush1.bf16.msra.mxu0 0
        %1617 = vmatprep.subr.bf16.mxu0 0
        %1618 = vmatpush1.bf16.msra.mxu0 0
        %1619 = vmatprep.subr.bf16.mxu0 0
        %1620 = vmatpush1.bf16.msra.mxu0 0
        %1621 = vmatprep.subr.bf16.mxu0 0
        %1622 = vmatpush1.bf16.msra.mxu0 0
        %1623 = vmatprep.subr.bf16.mxu0 0
        %1624 = vmatpush1.bf16.msra.mxu0 0
        %1625 = vmatprep.subr.bf16.mxu0 %v1602
        %1626 = vmatpush1.bf16.msra.mxu0 %v1601
        %1627 = vmatprep.subr.bf16.mxu0 %v1600
        %1628 = vmatpush1.bf16.msra.mxu0 %v1599
        %1629 = vmatprep.subr.bf16.mxu0 0
        %1630 = vmatpush2.bf16.msra.mxu0 0
        %1631 = vmatprep.subr.bf16.mxu0 0
        %1632 = vmatpush2.bf16.msra.mxu0 0
        %1633 = vmatprep.subr.bf16.mxu0 0
        %1634 = vmatpush2.bf16.msra.mxu0 0
        %1635 = vmatprep.subr.bf16.mxu0 0
        %1636 = vmatpush2.bf16.msra.mxu0 0
        %1637 = vmatprep.subr.bf16.mxu0 0
        %1638 = vmatpush2.bf16.msra.mxu0 0
        %1639 = vmatprep.subr.bf16.mxu0 0
        %1640 = vmatpush2.bf16.msra.mxu0 0
        %1641 = vmatprep.subr.bf16.mxu0 0
        %1642 = vmatpush2.bf16.msra.mxu0 0
        %1643 = vmatprep.subr.bf16.mxu0 0
        %1644 = vmatpush2.bf16.msra.mxu0 0
        %1645 = vmatprep.mubr.bf16.mxu0 0
        %1646 = vmatmul.mubr.bf16.gmra.mxu0 %v1608
        %v1647 = vpop.f32.mrf.mxu0
        %v1648 = vadd.f32 0.0, %v1647
        %v1649 = vpop.f32.mrf.mxu0
        %v1650 = vadd.f32 0.0, %v1649
        %v1651 = vpop.f32.mrf.mxu0
        %v1652 = vadd.f32 0.0, %v1651
        %v1653 = vpop.f32.mrf.mxu0
        %v1654 = vadd.f32 0.0, %v1653
        %1655 = vmatprep.mubr.bf16.mxu0 0
        %1656 = vmatmul.mubr.bf16.gmra.mxu0 %v1611
        %v1657 = vpop.f32.mrf.mxu0
        %v1658 = vadd.f32 0.0, %v1657
        %v1659 = vpop.f32.mrf.mxu0
        %v1660 = vadd.f32 0.0, %v1659
        %v1661 = vpop.f32.mrf.mxu0
        %v1662 = vadd.f32 0.0, %v1661
        %v1663 = vpop.f32.mrf.mxu0
        %v1664 = vadd.f32 0.0, %v1663
        %1665 = vdwg.mxu0
        %v1666 = vadd.f32 %v1522, %v1648
        %v1667 = vadd.f32 %v1523, %v1650
        %v1668 = vadd.f32 %v1524, %v1652
        %v1669 = vadd.f32 %v1525, %v1654
        %v1670 = vadd.f32 %v1526, %v1658
        %v1671 = vadd.f32 %v1527, %v1660
        %v1672 = vadd.f32 %v1528, %v1662
        %v1673 = vadd.f32 %v1529, %v1664
        %v1674 = vld [vmem:[%s3] sm:$0xff]
        %v1675 = vld [vmem:[%s3 + $0x8] sm:$0xff]
        %v1676 = vld [vmem:[%s3 + $0x10] sm:$0xff]
        %v1677 = vld [vmem:[%s3 + $0x18] sm:$0xff]
        %1679 = vset.pattern.permute.xlu0 0
        %1680 = vperm.xlu0 %1679, %v1674
        %v1681 = vpop.permute.xlu0 %1680
        %1684 = vset.pattern.permute.xlu0 0
        %1685 = vperm.xlu0 %1684, %v1675
        %v1686 = vpop.permute.xlu0 %1685
        %1689 = vset.pattern.permute.xlu0 0
        %1690 = vperm.xlu0 %1689, %v1676
        %v1691 = vpop.permute.xlu0 %1690
        %1694 = vset.pattern.permute.xlu0 0
        %1695 = vperm.xlu0 %1694, %v1677
        %v1696 = vpop.permute.xlu0 %1695
        %v1698 = vadd.f32 %v1666, %v1681
        %v1699 = vadd.f32 %v1667, %v1681
        %v1700 = vadd.f32 %v1668, %v1686
        %v1701 = vadd.f32 %v1669, %v1686
        %v1702 = vadd.f32 %v1670, %v1691
        %v1703 = vadd.f32 %v1671, %v1691
        %v1704 = vadd.f32 %v1672, %v1696
        %v1705 = vadd.f32 %v1673, %v1696
        %v1706 = vmax.f32 %v1698, 0.0
        %v1707 = vmax.f32 %v1699, 0.0
        %v1708 = vmax.f32 %v1700, 0.0
        %v1709 = vmax.f32 %v1701, 0.0
        %v1710 = vmax.f32 %v1702, 0.0
        %v1711 = vmax.f32 %v1703, 0.0
        %v1712 = vmax.f32 %v1704, 0.0
        %v1713 = vmax.f32 %v1705, 0.0
        %v1714 = vpack.c.bf16 %v1708, %v1706
        %v1715 = vpack.c.bf16 %v1709, %v1707
        %v1716 = vpack.c.bf16 %v1712, %v1710
        %v1717 = vpack.c.bf16 %v1713, %v1711
        %v1718 = vld [vmem:[%s4] sm:$0xf]
        %v1719 = vld [vmem:[%s4 + $0x4] sm:$0xf]
        %v1720 = vld [vmem:[%s5] sm:$0xff]
        %v1721 = vld [vmem:[%s5 + $0x8] sm:$0x7f]
        %1723 = vset.pattern.permute.xlu0 0
        %1724 = vperm.xlu0 %1723, %v1720
        %v1725 = vpop.permute.xlu0 %1724
        %1728 = vset.pattern.permute.xlu0 0
        %1729 = vperm.xlu0 %1728, %v1721
        %v1730 = vpop.permute.xlu0 %1729
        %v1734 = vunpack.c.l.b16 %v1718
        %v1735 = vunpack.c.l.b16 %v1719
        %v1736 = vpack.c.b16 %v1735, %v1734
        %v1738 = vsel %vm592, %v1736, 0
        %1740 = vmatprep.subr.bf16.mxu0 0
        %1741 = vmatpush1.bf16.msra.mxu0 0
        %1742 = vmatprep.subr.bf16.mxu0 0
        %1743 = vmatpush1.bf16.msra.mxu0 0
        %1744 = vmatprep.subr.bf16.mxu0 0
        %1745 = vmatpush1.bf16.msra.mxu0 0
        %1746 = vmatprep.subr.bf16.mxu0 0
        %1747 = vmatpush1.bf16.msra.mxu0 0
        %1748 = vmatprep.subr.bf16.mxu0 0
        %1749 = vmatpush1.bf16.msra.mxu0 0
        %1750 = vmatprep.subr.bf16.mxu0 0
        %1751 = vmatpush1.bf16.msra.mxu0 0
        %1752 = vmatprep.subr.bf16.mxu0 %v1717
        %1753 = vmatpush1.bf16.msra.mxu0 %v1716
        %1754 = vmatprep.subr.bf16.mxu0 %v1715
        %1755 = vmatpush1.bf16.msra.mxu0 %v1714
        %1756 = vmatprep.subr.bf16.mxu0 0
        %1757 = vmatpush2.bf16.msra.mxu0 0
        %1758 = vmatprep.subr.bf16.mxu0 0
        %1759 = vmatpush2.bf16.msra.mxu0 0
        %1760 = vmatprep.subr.bf16.mxu0 0
        %1761 = vmatpush2.bf16.msra.mxu0 0
        %1762 = vmatprep.subr.bf16.mxu0 0
        %1763 = vmatpush2.bf16.msra.mxu0 0
        %1764 = vmatprep.subr.bf16.mxu0 0
        %1765 = vmatpush2.bf16.msra.mxu0 0
        %1766 = vmatprep.subr.bf16.mxu0 0
        %1767 = vmatpush2.bf16.msra.mxu0 0
        %1768 = vmatprep.subr.bf16.mxu0 0
        %1769 = vmatpush2.bf16.msra.mxu0 0
        %1770 = vmatprep.subr.bf16.mxu0 0
        %1771 = vmatpush2.bf16.msra.mxu0 0
        %1772 = vmatprep.mubr.bf16.mxu0 0
        %1773 = vmatmul.mubr.bf16.gmra.mxu0 %v1738
        %v1774 = vpop.f32.mrf.mxu0
        %v1775 = vadd.f32 %v1725, %v1774
        %v1776 = vpop.f32.mrf.mxu0
        %v1777 = vadd.f32 %v1725, %v1776
        %v1778 = vpop.f32.mrf.mxu0
        %v1779 = vadd.f32 %v1730, %v1778
        %v1780 = vpop.f32.mrf.mxu0
        %v1781 = vadd.f32 %v1730, %v1780
        %1782 = vdwg.mxu0
        %1783 = vst [vmem:[%s332] sm:$0xff] %v1775
        %1784 = vst [vmem:[%s332 + $0x8] sm:$0xff] %v1777
        %1785 = vst [vmem:[%s332 + $0x10] sm:$0x7f] %v1779
        %1786 = vst [vmem:[%s332 + $0x18] sm:$0x7f] %v1781
        %s1787 = smul.u32 2, %s25
        %p1788 = scmp.lt.s32.totalorder %s24, 1
        %s1789 = scalar_select %p1788, %s24, 1
        %p1790 = scmp.lt.s32.totalorder %s1787, 1
        %s1791 = scalar_select %p1790, %s1787, 1
        %s1792 = smul.addr %s1789, 4
        %s1793 = sadd.s32 %s1791, %s1792
        %s1794 = smul.addr %s1793, 8
        %s1795 = scalar_lea.vmem %s6, %s1794
        // Predicated region
        $region49: #{tpu_custom_call.1} parent=43 // pred_check
          %p1796 = pneg %p192
        $region50: #{tpu_custom_call.1} parent=43 // pred_check_branch
          %1798 = sbr.rel (%p1796) target = $region52
        $region51: #{tpu_custom_call.1} parent=43 // pred_region
          %s1799 = smul.u32 2, %s25
        $region52: #{tpu_custom_call.1} parent=43 // pred_fallthru
          _
      $region44: #{tpu_custom_call.1} parent=5 // pred_fallthru
        _
      %p1800 = scmp.le.s32.totalorder 2, %s15
      // Predicated region
      $region53: #{tpu_custom_call.1} parent=5 // pred_check
        %p1801 = pneg %p1800
      $region54: #{tpu_custom_call.1} parent=5 // pred_check_branch
        %1803 = sbr.rel (%p1801) target = $region56
      $region55: #{tpu_custom_call.1} parent=5 // pred_region
        %s1804 = ssub.s32 %s15, 2
        // Predicated region
        $region57: #{tpu_custom_call.1} parent=55 // pred_check
          %p1805 = pneg %p198
        $region58: #{tpu_custom_call.1} parent=55 // pred_check_branch
          %1807 = sbr.rel (%p1805) target = $region60
        $region59: #{tpu_custom_call.1} parent=55 // pred_region
          %s1808 = smul.u32 2, %s27
          %p1809 = scmp.lt.s32.totalorder %s26, 1
          %s1810 = scalar_select %p1809, %s26, 1
          %p1811 = scmp.lt.s32.totalorder %s1808, 1
          %s1812 = scalar_select %p1811, %s1808, 1
          %s1813 = smul.addr %s1810, 4
          %s1814 = sadd.s32 %s1812, %s1813
          %s1815 = smul.addr %s1814, 8
          %s1816 = scalar_lea.vmem %s6, %s1815
        $region60: #{tpu_custom_call.1} parent=55 // pred_fallthru
          _
      $region56: #{tpu_custom_call.1} parent=5 // pred_fallthru
        _
    $region6: #{tpu_custom_call.1} parent=1 // loop_footer
      %s19 = sadd.s32 1, %s15
    $region7: #{tpu_custom_call.1} parent=1 // loop_footer_branch
      %14 = sbr.rel target = $region3
    $region8: #{tpu_custom_call.1} parent=1 // loop_exit
      _
    %1817 = vsyncpa [#allocation4], 1
    %s1818 = scalar_lea.sflag [#allocation4], 1
    %1819 = vsyncpa %s1818, 1

</llo_original>
